<compile_context>
chip_gen: v7x
topology: tpu7x:2x2x1
jax: 0.10.0
libtpu: 0.0.40
codegen_flags: <defaults>
</compile_context>

<pallas_src>
import numpy as np
import jax
import jax.numpy as jnp
from jax.experimental import pallas as pl
from jax.experimental.pallas import tpu as pltpu

# Small, module-consistent shapes.
N, S, D, H = 2, 8, 32, 4          # batch, seq_len, hidden_size, num_head
HD = D // H                        # head_dim
NS = N * S                         # batch-folded row count
EPS = 1e-5                         # nn.LayerNorm default eps
INV_SQRT2 = 0.7071067811865476
NEG_BIG = -1e30                    # finite "masked out" additive bias (no NaN hazard)


def _gelu_exact(x):
    # Exact (erf-based) GELU, matching torch.nn.GELU() default.
    return 0.5 * x * (1.0 + jax.lax.erf(x * INV_SQRT2))


def encoder_kernel(x_ref, bias_ref, wqkv_ref, wo_ref, w1_ref, w2_ref, ln_ref,
                   o_ref, ctx_ref):
    x = x_ref[...]                    # (NS, D)   batch-folded hidden state
    bias = bias_ref[...]              # (NS, NS)  additive attn bias (0 / -1e30)
    wqkv = wqkv_ref[...]              # (D, 3D)   [Wq^T | Wk^T | Wv^T]
    ln = ln_ref[...]                  # (2, D)    row 0 = LN weight, row 1 = LN bias
    lnw = ln[0:1, :]
    lnb = ln[1:2, :]

    # --- fused QKV projection (one wide matmul); fold 1/sqrt(HD) into q once ---
    qkv = jnp.dot(x, wqkv, preferred_element_type=jnp.float32)        # (NS, 3D)
    scale = jnp.float32(1.0 / (HD ** 0.5))
    q = qkv[:, 0:D] * scale
    k = qkv[:, D:2 * D]
    v = qkv[:, 2 * D:3 * D]

    # --- multi-head self attention, batch folded into each head's matmuls ---
    # H is tiny & static; all slices are static.  Each head's context goes into its
    # lane slice of the (NS, D) VMEM scratch; Wo is applied once after the loop.
    for h in range(H):
        c0, c1 = h * HD, (h + 1) * HD
        qh = q[:, c0:c1]                                              # (NS, HD)
        kh = k[:, c0:c1]
        vh = v[:, c0:c1]
        # scores = qh @ kh^T over ALL NS rows; cross-batch pairs and padded keys are
        # killed by the precomputed additive bias (scaling already folded into q).
        s = jax.lax.dot_general(qh, kh, (((1,), (1,)), ((), ())),
                                preferred_element_type=jnp.float32)   # (NS, NS)
        s = s + bias
        s = s - jnp.max(s, axis=-1, keepdims=True)
        p = jnp.exp(s)
        p = p / jnp.sum(p, axis=-1, keepdims=True)                    # exact softmax
        ctx_ref[:, c0:c1] = jnp.dot(p, vh, preferred_element_type=jnp.float32)

    # --- single deferred output projection ---
    mha = jnp.dot(ctx_ref[...], wo_ref[...], preferred_element_type=jnp.float32)

    def layer_norm(z):
        mu = jnp.mean(z, axis=-1, keepdims=True)
        var = jnp.mean((z - mu) ** 2, axis=-1, keepdims=True)
        return (z - mu) * jax.lax.rsqrt(var + EPS) * lnw + lnb

    # --- residual 1 + LayerNorm ---
    n1 = layer_norm(x + mha)
    # --- FNN: Linear(D -> 4D), GELU, Linear(4D -> D)  (pre-transposed weights) ---
    h1 = _gelu_exact(jnp.dot(n1, w1_ref[...], preferred_element_type=jnp.float32))  # (NS, 4D)
    f = jnp.dot(h1, w2_ref[...], preferred_element_type=jnp.float32)                # (NS, D)
    # --- residual 2 + LayerNorm (same shared LayerNorm params, as in the module) ---
    o_ref[...] = layer_norm(n1 + f).astype(o_ref.dtype)


def prepare_encoder_inputs(params, mask_np):
    """One-time prep OUTSIDE the per-call jit path:
       weight transposes / fusion + the (NS, NS) additive attention bias."""
    wq, wk, wv, wo, w1, w2, lnw, lnb = params
    wqkv_t = jnp.concatenate([wq.T, wk.T, wv.T], axis=1)   # (D, 3D)
    wo_t = jnp.asarray(wo.T)                               # (D, D)
    w1_t = jnp.asarray(w1.T)                               # (D, 4D)
    w2_t = jnp.asarray(w2.T)                               # (4D, D)
    ln = jnp.concatenate([lnw, lnb], axis=0)               # (2, D)

    # Additive bias over the batch-folded (NS, NS) score matrix:
    #   0        where query and key rows belong to the same batch AND key not padded
    #   -1e30    otherwise (cross-batch pair or padded key)
    batch_ids = np.arange(NS) // S
    same_batch = batch_ids[:, None] == batch_ids[None, :]
    padded_key = mask_np.reshape(NS).astype(bool)
    allowed = same_batch & (~padded_key[None, :])
    bias = jnp.asarray(np.where(allowed, 0.0, NEG_BIG).astype(np.float32))  # (NS, NS)

    return (bias, wqkv_t, wo_t, w1_t, w2_t, ln)


@jax.jit
def encoder_forward(x, prepped):
    """x: (N, S, D) f32; prepped: output of prepare_encoder_inputs (built once)."""
    bias, wqkv_t, wo_t, w1_t, w2_t, ln = prepped
    x2d = x.reshape(NS, D)                                 # batch-fold (free reshape)
    out2d = pl.pallas_call(
        encoder_kernel,
        out_shape=jax.ShapeDtypeStruct((NS, D), jnp.float32),
        # No grid: single invocation; every operand is a whole-array VMEM block
        # (everything fits comfortably at these sizes on v5e/v6e/v7x).
        scratch_shapes=[pltpu.VMEM((NS, D), jnp.float32)],  # per-head ctx staging
    )(x2d, bias, wqkv_t, wo_t, w1_t, w2_t, ln)
    return out2d.reshape(N, S, D)


def reference(x, mask_bool, params):
    """Pure-JAX reference reproducing the PyTorch forward (eval mode)."""
    wq, wk, wv, wo, w1, w2, lnw, lnb = params
    q = (x @ wq.T).reshape(N, S, H, HD).transpose(0, 2, 1, 3)   # (N,H,S,HD)
    k = (x @ wk.T).reshape(N, S, H, HD).transpose(0, 2, 1, 3)
    v = (x @ wv.T).reshape(N, S, H, HD).transpose(0, 2, 1, 3)
    s = jnp.einsum('nhqd,nhkd->nhqk', q, k)
    s = jnp.where(mask_bool[:, None, None, :], -jnp.inf, s)
    p = jax.nn.softmax(s / (HD ** 0.5), axis=-1)
    hres = jnp.einsum('nhqk,nhkd->nhqd', p, v)
    attn = hres.transpose(0, 2, 1, 3).reshape(N, S, D)
    mha = attn @ wo.T

    def layer_norm(z):
        mu = jnp.mean(z, axis=-1, keepdims=True)
        var = jnp.mean((z - mu) ** 2, axis=-1, keepdims=True)
        return (z - mu) * jax.lax.rsqrt(var + EPS) * lnw + lnb

    n1 = layer_norm(x + mha)
    f = _gelu_exact(n1 @ w1.T) @ w2.T
    return layer_norm(n1 + f)


if __name__ == "__main__":
    key = jax.random.PRNGKey(0)
    kx, kq, kk, kv, ko, k1, k2 = jax.random.split(key, 7)

    x = jax.random.normal(kx, (N, S, D), dtype=jnp.float32)

    # key_padding_mask: True = padded position (excluded from attention keys)
    mask_np = np.zeros((N, S), dtype=bool)
    mask_np[1, -2:] = True
    mask_bool = jnp.asarray(mask_np)

    # Deterministic parameter init (bias=False -> no linear biases;
    # LayerNorm default init: weight=1, bias=0).
    scl = 0.05
    wq = jax.random.normal(kq, (D, D), dtype=jnp.float32) * scl
    wk = jax.random.normal(kk, (D, D), dtype=jnp.float32) * scl
    wv = jax.random.normal(kv, (D, D), dtype=jnp.float32) * scl
    wo = jax.random.normal(ko, (D, D), dtype=jnp.float32) * scl
    w1 = jax.random.normal(k1, (4 * D, D), dtype=jnp.float32) * scl
    w2 = jax.random.normal(k2, (D, 4 * D), dtype=jnp.float32) * scl
    lnw = jnp.ones((1, D), dtype=jnp.float32)
    lnb = jnp.zeros((1, D), dtype=jnp.float32)
    params = (wq, wk, wv, wo, w1, w2, lnw, lnb)

    # One-time prep (outside the per-call jit path).
    prepped = prepare_encoder_inputs(params, mask_np)

    out = encoder_forward(x, prepped)
    out = jax.block_until_ready(out)

    ref = reference(x, mask_bool, params)
    # Exact softmax divide + finite additive mask -> tight tolerance is safe.
    np.testing.assert_allclose(np.asarray(out), np.asarray(ref), atol=1e-4, rtol=1e-4)

    print("KERNEL_OK")
</pallas_src>

<mosaic_0001>
module attributes {stable_mosaic.version = 11 : i64} {
  func.func @encoder_kernel(%arg0: memref<16x32xf32, #tpu.memory_space<vmem>>, %arg1: memref<16x16xf32, #tpu.memory_space<vmem>>, %arg2: memref<32x96xf32, #tpu.memory_space<vmem>>, %arg3: memref<32x32xf32, #tpu.memory_space<vmem>>, %arg4: memref<32x128xf32, #tpu.memory_space<vmem>>, %arg5: memref<128x32xf32, #tpu.memory_space<vmem>>, %arg6: memref<2x32xf32, #tpu.memory_space<vmem>>, %arg7: memref<16x32xf32, #tpu.memory_space<vmem>>, %arg8: memref<16x32xf32, #tpu.memory_space<vmem>>) attributes {dimension_semantics = [], scalar_prefetch = 0 : i64, scratch_operands = 1 : i64, tpu.core_type = #tpu.core_type<tc>} {
    %c0 = arith.constant 0 : index
    %c0_0 = arith.constant 0 : index
    %0 = vector.load %arg0[%c0, %c0_0] : memref<16x32xf32, #tpu.memory_space<vmem>>, vector<16x32xf32>
    %c0_1 = arith.constant 0 : index
    %c0_2 = arith.constant 0 : index
    %1 = vector.load %arg1[%c0_1, %c0_2] : memref<16x16xf32, #tpu.memory_space<vmem>>, vector<16x16xf32>
    %c0_3 = arith.constant 0 : index
    %c0_4 = arith.constant 0 : index
    %2 = vector.load %arg2[%c0_3, %c0_4] : memref<32x96xf32, #tpu.memory_space<vmem>>, vector<32x96xf32>
    %c0_5 = arith.constant 0 : index
    %c0_6 = arith.constant 0 : index
    %3 = vector.load %arg6[%c0_5, %c0_6] : memref<2x32xf32, #tpu.memory_space<vmem>>, vector<2x32xf32>
    %4 = vector.extract_strided_slice %3 {offsets = [0, 0], sizes = [1, 32], strides = [1, 1]} : vector<2x32xf32> to vector<1x32xf32>
    %5 = vector.extract_strided_slice %3 {offsets = [1, 0], sizes = [1, 32], strides = [1, 1]} : vector<2x32xf32> to vector<1x32xf32>
    %cst = arith.constant dense<0.000000e+00> : vector<16x96xf32>
    %6 = tpu.matmul %0, %2, %cst {dimension_numbers = #tpu.dot_dimension_numbers<[1], [0], [0], [1], [0, 0, 1, 1], [], []>} : vector<16x32xf32>, vector<32x96xf32>, vector<16x96xf32> -> vector<16x96xf32>
    %7 = vector.extract_strided_slice %6 {offsets = [0, 0], sizes = [16, 32], strides = [1, 1]} : vector<16x96xf32> to vector<16x32xf32>
    %cst_7 = arith.constant 0.353553385 : f32
    %8 = vector.broadcast %cst_7 : f32 to vector<16x32xf32>
    %9 = arith.mulf %7, %8 : vector<16x32xf32>
    %10 = vector.extract_strided_slice %6 {offsets = [0, 32], sizes = [16, 32], strides = [1, 1]} : vector<16x96xf32> to vector<16x32xf32>
    %11 = vector.extract_strided_slice %6 {offsets = [0, 64], sizes = [16, 32], strides = [1, 1]} : vector<16x96xf32> to vector<16x32xf32>
    %12 = vector.extract_strided_slice %9 {offsets = [0, 0], sizes = [16, 8], strides = [1, 1]} : vector<16x32xf32> to vector<16x8xf32>
    %13 = vector.extract_strided_slice %10 {offsets = [0, 0], sizes = [16, 8], strides = [1, 1]} : vector<16x32xf32> to vector<16x8xf32>
    %14 = vector.extract_strided_slice %11 {offsets = [0, 0], sizes = [16, 8], strides = [1, 1]} : vector<16x32xf32> to vector<16x8xf32>
    %cst_8 = arith.constant dense<0.000000e+00> : vector<16x16xf32>
    %15 = tpu.matmul %12, %13, %cst_8 {dimension_numbers = #tpu.dot_dimension_numbers<[1], [1], [0], [0], [0, 0, 1, 0], [], []>} : vector<16x8xf32>, vector<16x8xf32>, vector<16x16xf32> -> vector<16x16xf32>
    %16 = arith.addf %15, %1 : vector<16x16xf32>
    %cst_9 = arith.constant dense<0xFF800000> : vector<16xf32>
    %17 = vector.multi_reduction <maximumf>, %16, %cst_9 [1] : vector<16x16xf32> to vector<16xf32>
    %18 = vector.shape_cast %17 : vector<16xf32> to vector<16x1xf32>
    %19 = vector.broadcast %18 : vector<16x1xf32> to vector<16x16xf32>
    %20 = arith.subf %16, %19 : vector<16x16xf32>
    %21 = math.exp %20 : vector<16x16xf32>
    %cst_10 = arith.constant dense<0.000000e+00> : vector<16xf32>
    %22 = vector.multi_reduction <add>, %21, %cst_10 [1] : vector<16x16xf32> to vector<16xf32>
    %23 = vector.shape_cast %22 : vector<16xf32> to vector<16x1xf32>
    %24 = vector.broadcast %23 : vector<16x1xf32> to vector<16x16xf32>
    %25 = arith.divf %21, %24 : vector<16x16xf32>
    %cst_11 = arith.constant dense<0.000000e+00> : vector<16x8xf32>
    %26 = tpu.matmul %25, %14, %cst_11 {dimension_numbers = #tpu.dot_dimension_numbers<[1], [0], [0], [1], [0, 0, 1, 1], [], []>} : vector<16x16xf32>, vector<16x8xf32>, vector<16x8xf32> -> vector<16x8xf32>
    %c0_12 = arith.constant 0 : index
    %c0_13 = arith.constant 0 : index
    %27 = vector.load %arg8[%c0_12, %c0_13] : memref<16x32xf32, #tpu.memory_space<vmem>>, vector<16x8xf32>
    tpu.vector_store %arg8[%c0_12, %c0_13], %26 {strides = array<i32>} : memref<16x32xf32, #tpu.memory_space<vmem>>, vector<16x8xf32>,
    %28 = vector.extract_strided_slice %9 {offsets = [0, 8], sizes = [16, 8], strides = [1, 1]} : vector<16x32xf32> to vector<16x8xf32>
    %29 = vector.extract_strided_slice %10 {offsets = [0, 8], sizes = [16, 8], strides = [1, 1]} : vector<16x32xf32> to vector<16x8xf32>
    %30 = vector.extract_strided_slice %11 {offsets = [0, 8], sizes = [16, 8], strides = [1, 1]} : vector<16x32xf32> to vector<16x8xf32>
    %cst_14 = arith.constant dense<0.000000e+00> : vector<16x16xf32>
    %31 = tpu.matmul %28, %29, %cst_14 {dimension_numbers = #tpu.dot_dimension_numbers<[1], [1], [0], [0], [0, 0, 1, 0], [], []>} : vector<16x8xf32>, vector<16x8xf32>, vector<16x16xf32> -> vector<16x16xf32>
    %32 = arith.addf %31, %1 : vector<16x16xf32>
    %cst_15 = arith.constant dense<0xFF800000> : vector<16xf32>
    %33 = vector.multi_reduction <maximumf>, %32, %cst_15 [1] : vector<16x16xf32> to vector<16xf32>
    %34 = vector.shape_cast %33 : vector<16xf32> to vector<16x1xf32>
    %35 = vector.broadcast %34 : vector<16x1xf32> to vector<16x16xf32>
    %36 = arith.subf %32, %35 : vector<16x16xf32>
    %37 = math.exp %36 : vector<16x16xf32>
    %cst_16 = arith.constant dense<0.000000e+00> : vector<16xf32>
    %38 = vector.multi_reduction <add>, %37, %cst_16 [1] : vector<16x16xf32> to vector<16xf32>
    %39 = vector.shape_cast %38 : vector<16xf32> to vector<16x1xf32>
    %40 = vector.broadcast %39 : vector<16x1xf32> to vector<16x16xf32>
    %41 = arith.divf %37, %40 : vector<16x16xf32>
    %cst_17 = arith.constant dense<0.000000e+00> : vector<16x8xf32>
    %42 = tpu.matmul %41, %30, %cst_17 {dimension_numbers = #tpu.dot_dimension_numbers<[1], [0], [0], [1], [0, 0, 1, 1], [], []>} : vector<16x16xf32>, vector<16x8xf32>, vector<16x8xf32> -> vector<16x8xf32>
    %c0_18 = arith.constant 0 : index
    %c8 = arith.constant 8 : index
    %43 = vector.load %arg8[%c0_18, %c8] : memref<16x32xf32, #tpu.memory_space<vmem>>, vector<16x8xf32>
    tpu.vector_store %arg8[%c0_18, %c8], %42 {strides = array<i32>} : memref<16x32xf32, #tpu.memory_space<vmem>>, vector<16x8xf32>,
    %44 = vector.extract_strided_slice %9 {offsets = [0, 16], sizes = [16, 8], strides = [1, 1]} : vector<16x32xf32> to vector<16x8xf32>
    %45 = vector.extract_strided_slice %10 {offsets = [0, 16], sizes = [16, 8], strides = [1, 1]} : vector<16x32xf32> to vector<16x8xf32>
    %46 = vector.extract_strided_slice %11 {offsets = [0, 16], sizes = [16, 8], strides = [1, 1]} : vector<16x32xf32> to vector<16x8xf32>
    %cst_19 = arith.constant dense<0.000000e+00> : vector<16x16xf32>
    %47 = tpu.matmul %44, %45, %cst_19 {dimension_numbers = #tpu.dot_dimension_numbers<[1], [1], [0], [0], [0, 0, 1, 0], [], []>} : vector<16x8xf32>, vector<16x8xf32>, vector<16x16xf32> -> vector<16x16xf32>
    %48 = arith.addf %47, %1 : vector<16x16xf32>
    %cst_20 = arith.constant dense<0xFF800000> : vector<16xf32>
    %49 = vector.multi_reduction <maximumf>, %48, %cst_20 [1] : vector<16x16xf32> to vector<16xf32>
    %50 = vector.shape_cast %49 : vector<16xf32> to vector<16x1xf32>
    %51 = vector.broadcast %50 : vector<16x1xf32> to vector<16x16xf32>
    %52 = arith.subf %48, %51 : vector<16x16xf32>
    %53 = math.exp %52 : vector<16x16xf32>
    %cst_21 = arith.constant dense<0.000000e+00> : vector<16xf32>
    %54 = vector.multi_reduction <add>, %53, %cst_21 [1] : vector<16x16xf32> to vector<16xf32>
    %55 = vector.shape_cast %54 : vector<16xf32> to vector<16x1xf32>
    %56 = vector.broadcast %55 : vector<16x1xf32> to vector<16x16xf32>
    %57 = arith.divf %53, %56 : vector<16x16xf32>
    %cst_22 = arith.constant dense<0.000000e+00> : vector<16x8xf32>
    %58 = tpu.matmul %57, %46, %cst_22 {dimension_numbers = #tpu.dot_dimension_numbers<[1], [0], [0], [1], [0, 0, 1, 1], [], []>} : vector<16x16xf32>, vector<16x8xf32>, vector<16x8xf32> -> vector<16x8xf32>
    %c0_23 = arith.constant 0 : index
    %c16 = arith.constant 16 : index
    %59 = vector.load %arg8[%c0_23, %c16] : memref<16x32xf32, #tpu.memory_space<vmem>>, vector<16x8xf32>
    tpu.vector_store %arg8[%c0_23, %c16], %58 {strides = array<i32>} : memref<16x32xf32, #tpu.memory_space<vmem>>, vector<16x8xf32>,
    %60 = vector.extract_strided_slice %9 {offsets = [0, 24], sizes = [16, 8], strides = [1, 1]} : vector<16x32xf32> to vector<16x8xf32>
    %61 = vector.extract_strided_slice %10 {offsets = [0, 24], sizes = [16, 8], strides = [1, 1]} : vector<16x32xf32> to vector<16x8xf32>
    %62 = vector.extract_strided_slice %11 {offsets = [0, 24], sizes = [16, 8], strides = [1, 1]} : vector<16x32xf32> to vector<16x8xf32>
    %cst_24 = arith.constant dense<0.000000e+00> : vector<16x16xf32>
    %63 = tpu.matmul %60, %61, %cst_24 {dimension_numbers = #tpu.dot_dimension_numbers<[1], [1], [0], [0], [0, 0, 1, 0], [], []>} : vector<16x8xf32>, vector<16x8xf32>, vector<16x16xf32> -> vector<16x16xf32>
    %64 = arith.addf %63, %1 : vector<16x16xf32>
    %cst_25 = arith.constant dense<0xFF800000> : vector<16xf32>
    %65 = vector.multi_reduction <maximumf>, %64, %cst_25 [1] : vector<16x16xf32> to vector<16xf32>
    %66 = vector.shape_cast %65 : vector<16xf32> to vector<16x1xf32>
    %67 = vector.broadcast %66 : vector<16x1xf32> to vector<16x16xf32>
    %68 = arith.subf %64, %67 : vector<16x16xf32>
    %69 = math.exp %68 : vector<16x16xf32>
    %cst_26 = arith.constant dense<0.000000e+00> : vector<16xf32>
    %70 = vector.multi_reduction <add>, %69, %cst_26 [1] : vector<16x16xf32> to vector<16xf32>
    %71 = vector.shape_cast %70 : vector<16xf32> to vector<16x1xf32>
    %72 = vector.broadcast %71 : vector<16x1xf32> to vector<16x16xf32>
    %73 = arith.divf %69, %72 : vector<16x16xf32>
    %cst_27 = arith.constant dense<0.000000e+00> : vector<16x8xf32>
    %74 = tpu.matmul %73, %62, %cst_27 {dimension_numbers = #tpu.dot_dimension_numbers<[1], [0], [0], [1], [0, 0, 1, 1], [], []>} : vector<16x16xf32>, vector<16x8xf32>, vector<16x8xf32> -> vector<16x8xf32>
    %c0_28 = arith.constant 0 : index
    %c24 = arith.constant 24 : index
    %75 = vector.load %arg8[%c0_28, %c24] : memref<16x32xf32, #tpu.memory_space<vmem>>, vector<16x8xf32>
    tpu.vector_store %arg8[%c0_28, %c24], %74 {strides = array<i32>} : memref<16x32xf32, #tpu.memory_space<vmem>>, vector<16x8xf32>,
    %c0_29 = arith.constant 0 : index
    %c0_30 = arith.constant 0 : index
    %76 = vector.load %arg8[%c0_29, %c0_30] : memref<16x32xf32, #tpu.memory_space<vmem>>, vector<16x32xf32>
    %c0_31 = arith.constant 0 : index
    %c0_32 = arith.constant 0 : index
    %77 = vector.load %arg3[%c0_31, %c0_32] : memref<32x32xf32, #tpu.memory_space<vmem>>, vector<32x32xf32>
    %cst_33 = arith.constant dense<0.000000e+00> : vector<16x32xf32>
    %78 = tpu.matmul %76, %77, %cst_33 {dimension_numbers = #tpu.dot_dimension_numbers<[1], [0], [0], [1], [0, 0, 1, 1], [], []>} : vector<16x32xf32>, vector<32x32xf32>, vector<16x32xf32> -> vector<16x32xf32>
    %79 = arith.addf %0, %78 : vector<16x32xf32>
    %cst_34 = arith.constant dense<0.000000e+00> : vector<16xf32>
    %80 = vector.multi_reduction <add>, %79, %cst_34 [1] : vector<16x32xf32> to vector<16xf32>
    %81 = vector.shape_cast %80 : vector<16xf32> to vector<16x1xf32>
    %cst_35 = arith.constant 3.200000e+01 : f32
    %82 = vector.broadcast %cst_35 : f32 to vector<16x1xf32>
    %83 = arith.divf %81, %82 : vector<16x1xf32>
    %84 = vector.broadcast %83 : vector<16x1xf32> to vector<16x32xf32>
    %85 = arith.subf %79, %84 : vector<16x32xf32>
    %86 = arith.mulf %85, %85 : vector<16x32xf32>
    %cst_36 = arith.constant dense<0.000000e+00> : vector<16xf32>
    %87 = vector.multi_reduction <add>, %86, %cst_36 [1] : vector<16x32xf32> to vector<16xf32>
    %88 = vector.shape_cast %87 : vector<16xf32> to vector<16x1xf32>
    %cst_37 = arith.constant 3.200000e+01 : f32
    %89 = vector.broadcast %cst_37 : f32 to vector<16x1xf32>
    %90 = arith.divf %88, %89 : vector<16x1xf32>
    %91 = vector.broadcast %83 : vector<16x1xf32> to vector<16x32xf32>
    %92 = arith.subf %79, %91 : vector<16x32xf32>
    %cst_38 = arith.constant 9.99999974E-6 : f32
    %93 = vector.broadcast %cst_38 : f32 to vector<16x1xf32>
    %94 = arith.addf %90, %93 : vector<16x1xf32>
    %95 = math.rsqrt %94 : vector<16x1xf32>
    %96 = vector.broadcast %95 : vector<16x1xf32> to vector<16x32xf32>
    %97 = arith.mulf %92, %96 : vector<16x32xf32>
    %98 = vector.broadcast %4 : vector<1x32xf32> to vector<16x32xf32>
    %99 = arith.mulf %97, %98 : vector<16x32xf32>
    %100 = vector.broadcast %5 : vector<1x32xf32> to vector<16x32xf32>
    %101 = arith.addf %99, %100 : vector<16x32xf32>
    %c0_39 = arith.constant 0 : index
    %c0_40 = arith.constant 0 : index
    %102 = vector.load %arg4[%c0_39, %c0_40] : memref<32x128xf32, #tpu.memory_space<vmem>>, vector<32x128xf32>
    %cst_41 = arith.constant dense<0.000000e+00> : vector<16x128xf32>
    %103 = tpu.matmul %101, %102, %cst_41 {dimension_numbers = #tpu.dot_dimension_numbers<[1], [0], [0], [1], [0, 0, 1, 1], [], []>} : vector<16x32xf32>, vector<32x128xf32>, vector<16x128xf32> -> vector<16x128xf32>
    %cst_42 = arith.constant 5.000000e-01 : f32
    %104 = vector.broadcast %cst_42 : f32 to vector<16x128xf32>
    %105 = arith.mulf %104, %103 : vector<16x128xf32>
    %cst_43 = arith.constant 0.707106769 : f32
    %106 = vector.broadcast %cst_43 : f32 to vector<16x128xf32>
    %107 = arith.mulf %103, %106 : vector<16x128xf32>
    %108 = math.erf %107 : vector<16x128xf32>
    %cst_44 = arith.constant 1.000000e+00 : f32
    %109 = vector.broadcast %cst_44 : f32 to vector<16x128xf32>
    %110 = arith.addf %109, %108 : vector<16x128xf32>
    %111 = arith.mulf %105, %110 : vector<16x128xf32>
    %c0_45 = arith.constant 0 : index
    %c0_46 = arith.constant 0 : index
    %112 = vector.load %arg5[%c0_45, %c0_46] : memref<128x32xf32, #tpu.memory_space<vmem>>, vector<128x32xf32>
    %cst_47 = arith.constant dense<0.000000e+00> : vector<16x32xf32>
    %113 = tpu.matmul %111, %112, %cst_47 {dimension_numbers = #tpu.dot_dimension_numbers<[1], [0], [0], [1], [0, 0, 1, 1], [], []>} : vector<16x128xf32>, vector<128x32xf32>, vector<16x32xf32> -> vector<16x32xf32>
    %114 = arith.addf %101, %113 : vector<16x32xf32>
    %cst_48 = arith.constant dense<0.000000e+00> : vector<16xf32>
    %115 = vector.multi_reduction <add>, %114, %cst_48 [1] : vector<16x32xf32> to vector<16xf32>
    %116 = vector.shape_cast %115 : vector<16xf32> to vector<16x1xf32>
    %cst_49 = arith.constant 3.200000e+01 : f32
    %117 = vector.broadcast %cst_49 : f32 to vector<16x1xf32>
    %118 = arith.divf %116, %117 : vector<16x1xf32>
    %119 = vector.broadcast %118 : vector<16x1xf32> to vector<16x32xf32>
    %120 = arith.subf %114, %119 : vector<16x32xf32>
    %121 = arith.mulf %120, %120 : vector<16x32xf32>
    %cst_50 = arith.constant dense<0.000000e+00> : vector<16xf32>
    %122 = vector.multi_reduction <add>, %121, %cst_50 [1] : vector<16x32xf32> to vector<16xf32>
    %123 = vector.shape_cast %122 : vector<16xf32> to vector<16x1xf32>
    %cst_51 = arith.constant 3.200000e+01 : f32
    %124 = vector.broadcast %cst_51 : f32 to vector<16x1xf32>
    %125 = arith.divf %123, %124 : vector<16x1xf32>
    %126 = vector.broadcast %118 : vector<16x1xf32> to vector<16x32xf32>
    %127 = arith.subf %114, %126 : vector<16x32xf32>
    %cst_52 = arith.constant 9.99999974E-6 : f32
    %128 = vector.broadcast %cst_52 : f32 to vector<16x1xf32>
    %129 = arith.addf %125, %128 : vector<16x1xf32>
    %130 = math.rsqrt %129 : vector<16x1xf32>
    %131 = vector.broadcast %130 : vector<16x1xf32> to vector<16x32xf32>
    %132 = arith.mulf %127, %131 : vector<16x32xf32>
    %133 = vector.broadcast %4 : vector<1x32xf32> to vector<16x32xf32>
    %134 = arith.mulf %132, %133 : vector<16x32xf32>
    %135 = vector.broadcast %5 : vector<1x32xf32> to vector<16x32xf32>
    %136 = arith.addf %134, %135 : vector<16x32xf32>
    %c0_53 = arith.constant 0 : index
    %c0_54 = arith.constant 0 : index
    %137 = vector.load %arg7[%c0_53, %c0_54] : memref<16x32xf32, #tpu.memory_space<vmem>>, vector<16x32xf32>
    tpu.vector_store %arg7[%c0_53, %c0_54], %136 {strides = array<i32>} : memref<16x32xf32, #tpu.memory_space<vmem>>, vector<16x32xf32>,
    return
  }
}

</mosaic_0001>

<llo_original>
// kernel: encoder_forward.1
$region0: #{encoder_forward.1}
  #allocation0 [shape = 'u32[]', space=smem, size = 0x4, offset = 0x4, fixed_abs, tag = 'smem constant byte address 0x4 - core index']
  #allocation1 [shape = 'u32[144,128]{1,0:T(1,128)}', space=vmem, size = 0x12000, scoped, tag = 'internal scratch']
  #allocation2 [shape = 'f32[16,32]{1,0:T(8,128)}', space=vmem, size = 0x2000, scoped, tag = 'scratch operand']
  %s0 = inlined_call_operand.vmem [shape: f32[16,32], index: 0, kind: input, shape index: {}]
  %s1 = inlined_call_operand.vmem [shape: f32[16,16], index: 1, kind: input, shape index: {}]
  %s2 = inlined_call_operand.vmem [shape: f32[32,96], index: 2, kind: input, shape index: {}]
  %s3 = inlined_call_operand.vmem [shape: f32[32,32], index: 3, kind: input, shape index: {}]
  %s4 = inlined_call_operand.vmem [shape: f32[32,128], index: 4, kind: input, shape index: {}]
  %s5 = inlined_call_operand.vmem [shape: f32[128,32], index: 5, kind: input, shape index: {}]
  %s6 = inlined_call_operand.vmem [shape: f32[2,32], index: 6, kind: input, shape index: {}]
  %s7 = inlined_call_operand.hbm [shape: f32[16,32], index: 7, kind: output, shape index: {}]
  %s8 = sld [smem:[#allocation0]]
  $region38: #{encoder_forward.1} parent=0
    _
  %s10 = ssub.s32 1, %s8
  %s11 = scalar_select 0, %s10, %s8
  $region1: #{encoder_forward.1} parent=0
    #allocation3 [shape = 'u8[8192]{0}', space=vmem, size = 0x2000, scoped, tag = 'output window, operand 0, single buffered']
    #allocation4 [shape = 's32[1]{0}', space=sflag, size = 0x4, scoped, tag = 'scoped memory for encoder_forward.1']
    %12 = vsyncpa [#allocation4], 0
    // Predicated region
    $region2: #{encoder_forward.1} parent=1 // pred_check
      _
    $region3: #{encoder_forward.1} parent=1 // pred_check_branch
      %14 = sbr.rel (0) target = $region5
    $region4: #{encoder_forward.1} parent=1 // pred_region
      _
    $region5: #{encoder_forward.1} parent=1 // pred_fallthru
      _
    // Predicated region
    $region6: #{encoder_forward.1} parent=1 // pred_check
      _
    $region7: #{encoder_forward.1} parent=1 // pred_check_branch
      %16 = sbr.rel (0) target = $region9
    $region8: #{encoder_forward.1} parent=1 // pred_region
      _
    $region9: #{encoder_forward.1} parent=1 // pred_fallthru
      _
    // Predicated region
    $region10: #{encoder_forward.1} parent=1 // pred_check
      _
    $region11: #{encoder_forward.1} parent=1 // pred_check_branch
      %18 = sbr.rel (0) target = $region13
    $region12: #{encoder_forward.1} parent=1 // pred_region
      _
    $region13: #{encoder_forward.1} parent=1 // pred_fallthru
      _
    // Predicated region
    $region14: #{encoder_forward.1} parent=1 // pred_check
      _
    $region15: #{encoder_forward.1} parent=1 // pred_check_branch
      %20 = sbr.rel (0) target = $region17
    $region16: #{encoder_forward.1} parent=1 // pred_region
      _
    $region17: #{encoder_forward.1} parent=1 // pred_fallthru
      _
    // Predicated region
    $region18: #{encoder_forward.1} parent=1 // pred_check
      _
    $region19: #{encoder_forward.1} parent=1 // pred_check_branch
      %22 = sbr.rel (0) target = $region21
    $region20: #{encoder_forward.1} parent=1 // pred_region
      _
    $region21: #{encoder_forward.1} parent=1 // pred_fallthru
      _
    // Predicated region
    $region22: #{encoder_forward.1} parent=1 // pred_check
      _
    $region23: #{encoder_forward.1} parent=1 // pred_check_branch
      %24 = sbr.rel (0) target = $region25
    $region24: #{encoder_forward.1} parent=1 // pred_region
      _
    $region25: #{encoder_forward.1} parent=1 // pred_fallthru
      _
    // Predicated region
    $region26: #{encoder_forward.1} parent=1 // pred_check
      _
    $region27: #{encoder_forward.1} parent=1 // pred_check_branch
      %26 = sbr.rel (0) target = $region29
    $region28: #{encoder_forward.1} parent=1 // pred_region
      _
    $region29: #{encoder_forward.1} parent=1 // pred_fallthru
      _
    %v27 = vld [vmem:[%s0] sm:$0xff]
    %v28 = vld [vmem:[%s0 + $0x8] sm:$0xff]
    %v29 = vld [vmem:[%s1] sm:$0xff]
    %v30 = vld [vmem:[%s1 + $0x8] sm:$0xff]
    %v31 = vld [vmem:[%s2] sm:$0xff]
    %v32 = vld [vmem:[%s2 + $0x8] sm:$0xff]
    %v33 = vld [vmem:[%s2 + $0x10] sm:$0xff]
    %v34 = vld [vmem:[%s2 + $0x18] sm:$0xff]
    %v35 = vld [vmem:[%s6] sm:$0x3]
    %vm36 = vcmask 261120
    %v38 = vsel %vm36, %v27, 0
    %v41 = vsel %vm36, %v28, 0
    %43 = vmatprep.subr.mxu0 0.0
    %44 = vmatpush1.msra.mxu0 %v31
    %45 = vmatprep.subr.mxu0 0.0
    %46 = vmatpush1.msra.mxu0 %v32
    %47 = vmatprep.subr.mxu0 0.0
    %48 = vmatpush1.msra.mxu0 %v33
    %49 = vmatprep.subr.mxu0 0.0
    %50 = vmatpush1.msra.mxu0 %v34
    %51 = vmatprep.subr.mxu0 0.0
    %52 = vmatpush1.msra.mxu0 0.0
    %53 = vmatprep.subr.mxu0 0.0
    %54 = vmatpush1.msra.mxu0 0.0
    %55 = vmatprep.subr.mxu0 0.0
    %56 = vmatpush1.msra.mxu0 0.0
    %57 = vmatprep.subr.mxu0 0.0
    %58 = vmatpush1.msra.mxu0 0.0
    %59 = vmatprep.subr.mxu0 0.0
    %60 = vmatpush1.msra.mxu0 0.0
    %61 = vmatprep.subr.mxu0 0.0
    %62 = vmatpush1.msra.mxu0 0.0
    %63 = vmatprep.subr.mxu0 0.0
    %64 = vmatpush1.msra.mxu0 0.0
    %65 = vmatprep.subr.mxu0 0.0
    %66 = vmatpush1.msra.mxu0 0.0
    %67 = vmatprep.subr.mxu0 0.0
    %68 = vmatpush1.msra.mxu0 0.0
    %69 = vmatprep.subr.mxu0 0.0
    %70 = vmatpush1.msra.mxu0 0.0
    %71 = vmatprep.subr.mxu0 0.0
    %72 = vmatpush1.msra.mxu0 0.0
    %73 = vmatprep.subr.mxu0 0.0
    %74 = vmatpush1.msra.mxu0 0.0
    %75 = vmatprep.subr.mxu0 0.0
    %76 = vmatpush1.msra.mxu0 0.0
    %77 = vmatprep.subr.mxu0 0.0
    %78 = vmatpush1.msra.mxu0 0.0
    %79 = vmatprep.subr.mxu0 0.0
    %80 = vmatpush1.msra.mxu0 0.0
    %81 = vmatprep.subr.mxu0 0.0
    %82 = vmatpush1.msra.mxu0 0.0
    %83 = vmatprep.subr.mxu0 0.0
    %84 = vmatpush1.msra.mxu0 0.0
    %85 = vmatprep.subr.mxu0 0.0
    %86 = vmatpush1.msra.mxu0 0.0
    %87 = vmatprep.subr.mxu0 0.0
    %88 = vmatpush1.msra.mxu0 0.0
    %89 = vmatprep.subr.mxu0 0.0
    %90 = vmatpush1.msra.mxu0 0.0
    %91 = vmatprep.subr.mxu0 0.0
    %92 = vmatpush1.msra.mxu0 0.0
    %93 = vmatprep.subr.mxu0 0.0
    %94 = vmatpush1.msra.mxu0 0.0
    %95 = vmatprep.subr.mxu0 0.0
    %96 = vmatpush1.msra.mxu0 0.0
    %97 = vmatprep.subr.mxu0 0.0
    %98 = vmatpush1.msra.mxu0 0.0
    %99 = vmatprep.subr.mxu0 0.0
    %100 = vmatpush1.msra.mxu0 0.0
    %101 = vmatprep.subr.mxu0 0.0
    %102 = vmatpush1.msra.mxu0 0.0
    %103 = vmatprep.subr.mxu0 0.0
    %104 = vmatpush1.msra.mxu0 0.0
    %105 = vmatprep.subr.mxu0 0.0
    %106 = vmatpush1.msra.mxu0 0.0
    %107 = vmatprep.mubr.f32.mxu0 0.0
    %108 = vmatmul.mubr.f32.gmra.mrb[0].mxu0 %v38
    %v109 = vpop.f32.mrb[0].mxu0
    %v110 = vadd.f32 0.0, %v109
    %v111 = vpop.f32.mrb[0].mxu0
    %112 = vmatprep.mubr.f32.mxu0 0.0
    %113 = vmatmul.mubr.f32.gmra.mrb[0].mxu0 %v41
    %v114 = vpop.f32.mrb[0].mxu0
    %v115 = vadd.f32 0.0, %v114
    %v116 = vpop.f32.mrb[0].mxu0
    %117 = vdwg.mxu0
    %v118 = vmul.f32 %v110, 0.35355338
    %v119 = vmul.f32 %v115, 0.35355338
    %122 = vrot.lane.b32.xlu0 %v110, 96
    %v123 = vpop.permute.xlu0 %122
    %124 = vrot.lane.b32.xlu0 %v115, 96
    %v125 = vpop.permute.xlu0 %124
    %vm126 = vcmask 64512
    %v128 = vsel %vm126, %v118, 0
    %v131 = vsel %vm126, %v119, 0
    %v133 = vsel %vm126, %v123, 0
    %v135 = vsel %vm126, %v125, 0
    %137 = vmatprep.subr.mxu0 0.0
    %138 = vmatpush1.xpose.msra.mxu0 %v133
    %139 = vmatprep.subr.mxu0 0.0
    %140 = vmatpush1.xpose.msra.mxu0 %v135
    %141 = vmatprep.subr.mxu0 0.0
    %142 = vmatpush1.xpose.msra.mxu0 0.0
    %143 = vmatprep.subr.mxu0 0.0
    %144 = vmatpush1.xpose.msra.mxu0 0.0
    %145 = vmatprep.subr.mxu0 0.0
    %146 = vmatpush1.xpose.msra.mxu0 0.0
    %147 = vmatprep.subr.mxu0 0.0
    %148 = vmatpush1.xpose.msra.mxu0 0.0
    %149 = vmatprep.subr.mxu0 0.0
    %150 = vmatpush1.xpose.msra.mxu0 0.0
    %151 = vmatprep.subr.mxu0 0.0
    %152 = vmatpush1.xpose.msra.mxu0 0.0
    %153 = vmatprep.subr.mxu0 0.0
    %154 = vmatpush1.xpose.msra.mxu0 0.0
    %155 = vmatprep.subr.mxu0 0.0
    %156 = vmatpush1.xpose.msra.mxu0 0.0
    %157 = vmatprep.subr.mxu0 0.0
    %158 = vmatpush1.xpose.msra.mxu0 0.0
    %159 = vmatprep.subr.mxu0 0.0
    %160 = vmatpush1.xpose.msra.mxu0 0.0
    %161 = vmatprep.subr.mxu0 0.0
    %162 = vmatpush1.xpose.msra.mxu0 0.0
    %163 = vmatprep.subr.mxu0 0.0
    %164 = vmatpush1.xpose.msra.mxu0 0.0
    %165 = vmatprep.subr.mxu0 0.0
    %166 = vmatpush1.xpose.msra.mxu0 0.0
    %167 = vmatprep.subr.mxu0 0.0
    %168 = vmatpush1.xpose.msra.mxu0 0.0
    %169 = vmatprep.subr.mxu0 0.0
    %170 = vmatpush1.xpose.msra.mxu0 0.0
    %171 = vmatprep.subr.mxu0 0.0
    %172 = vmatpush1.xpose.msra.mxu0 0.0
    %173 = vmatprep.subr.mxu0 0.0
    %174 = vmatpush1.xpose.msra.mxu0 0.0
    %175 = vmatprep.subr.mxu0 0.0
    %176 = vmatpush1.xpose.msra.mxu0 0.0
    %177 = vmatprep.subr.mxu0 0.0
    %178 = vmatpush1.xpose.msra.mxu0 0.0
    %179 = vmatprep.subr.mxu0 0.0
    %180 = vmatpush1.xpose.msra.mxu0 0.0
    %181 = vmatprep.subr.mxu0 0.0
    %182 = vmatpush1.xpose.msra.mxu0 0.0
    %183 = vmatprep.subr.mxu0 0.0
    %184 = vmatpush1.xpose.msra.mxu0 0.0
    %185 = vmatprep.subr.mxu0 0.0
    %186 = vmatpush1.xpose.msra.mxu0 0.0
    %187 = vmatprep.subr.mxu0 0.0
    %188 = vmatpush1.xpose.msra.mxu0 0.0
    %189 = vmatprep.subr.mxu0 0.0
    %190 = vmatpush1.xpose.msra.mxu0 0.0
    %191 = vmatprep.subr.mxu0 0.0
    %192 = vmatpush1.xpose.msra.mxu0 0.0
    %193 = vmatprep.subr.mxu0 0.0
    %194 = vmatpush1.xpose.msra.mxu0 0.0
    %195 = vmatprep.subr.mxu0 0.0
    %196 = vmatpush1.xpose.msra.mxu0 0.0
    %197 = vmatprep.subr.mxu0 0.0
    %198 = vmatpush1.xpose.msra.mxu0 0.0
    %199 = vmatprep.subr.mxu0 0.0
    %200 = vmatpush1.xpose.msra.mxu0 0.0
    %201 = vmatprep.mubr.f32.mxu0 0.0
    %202 = vmatmul.mubr.f32.gmra.mrb[0].mxu0 %v128
    %v203 = vpop.f32.mrb[0].mxu0
    %v204 = vadd.f32 %v29, %v203
    %v205 = vpop.f32.mrb[0].mxu0
    %206 = vmatprep.mubr.f32.mxu0 0.0
    %207 = vmatmul.mubr.f32.gmra.mrb[0].mxu0 %v131
    %v208 = vpop.f32.mrb[0].mxu0
    %v209 = vadd.f32 %v30, %v208
    %v210 = vpop.f32.mrb[0].mxu0
    %211 = vdwg.mxu0
    %vm212 = vcmask 130048
    %v213 = vsel %vm212, %v204, -inf
    %214 = vmax.xlane.f32.xlu0 %v213
    %v215 = vpop.xlane.xlu0 %214
    %v216 = vsel %vm212, %v209, -inf
    %217 = vmax.xlane.f32.xlu0 %v216
    %v218 = vpop.xlane.xlu0 %217
    %v219 = vsub.f32 %v204, %v215
    %v220 = vsub.f32 %v209, %v218
    %v221 = vmul.f32 %v219, 1.442695
    %v222 = vpow.pop %v221
    %v223 = vmul.f32 %v220, 1.442695
    %v224 = vpow.pop %v223
    %v225 = vsel %vm212, %v222, 0.0
    %226 = vadd.xlane.f32.xlu0 %v225
    %v227 = vpop.xlane.xlu0 %226
    %v228 = vsel %vm212, %v224, 0.0
    %229 = vadd.xlane.f32.xlu0 %v228
    %v230 = vpop.xlane.xlu0 %229
    %v231 = vrcp.pop %v227
    %v232 = vmul.f32 %v222, %v231
    %v233 = vrcp.pop %v230
    %v234 = vmul.f32 %v224, %v233
    %235 = vrot.lane.b32.xlu0 %v110, 64
    %v236 = vpop.permute.xlu0 %235
    %237 = vrot.lane.b32.xlu0 %v115, 64
    %v238 = vpop.permute.xlu0 %237
    %v242 = vsel %vm212, %v232, 0
    %v245 = vsel %vm212, %v234, 0
    %247 = vmatprep.subr.mxu0 0.0
    %248 = vmatpush1.msra.mxu0 %v236
    %249 = vmatprep.subr.mxu0 0.0
    %250 = vmatpush1.msra.mxu0 %v238
    %251 = vmatprep.subr.mxu0 0.0
    %252 = vmatpush1.msra.mxu0 0.0
    %253 = vmatprep.subr.mxu0 0.0
    %254 = vmatpush1.msra.mxu0 0.0
    %255 = vmatprep.subr.mxu0 0.0
    %256 = vmatpush1.msra.mxu0 0.0
    %257 = vmatprep.subr.mxu0 0.0
    %258 = vmatpush1.msra.mxu0 0.0
    %259 = vmatprep.subr.mxu0 0.0
    %260 = vmatpush1.msra.mxu0 0.0
    %261 = vmatprep.subr.mxu0 0.0
    %262 = vmatpush1.msra.mxu0 0.0
    %263 = vmatprep.subr.mxu0 0.0
    %264 = vmatpush1.msra.mxu0 0.0
    %265 = vmatprep.subr.mxu0 0.0
    %266 = vmatpush1.msra.mxu0 0.0
    %267 = vmatprep.subr.mxu0 0.0
    %268 = vmatpush1.msra.mxu0 0.0
    %269 = vmatprep.subr.mxu0 0.0
    %270 = vmatpush1.msra.mxu0 0.0
    %271 = vmatprep.subr.mxu0 0.0
    %272 = vmatpush1.msra.mxu0 0.0
    %273 = vmatprep.subr.mxu0 0.0
    %274 = vmatpush1.msra.mxu0 0.0
    %275 = vmatprep.subr.mxu0 0.0
    %276 = vmatpush1.msra.mxu0 0.0
    %277 = vmatprep.subr.mxu0 0.0
    %278 = vmatpush1.msra.mxu0 0.0
    %279 = vmatprep.subr.mxu0 0.0
    %280 = vmatpush1.msra.mxu0 0.0
    %281 = vmatprep.subr.mxu0 0.0
    %282 = vmatpush1.msra.mxu0 0.0
    %283 = vmatprep.subr.mxu0 0.0
    %284 = vmatpush1.msra.mxu0 0.0
    %285 = vmatprep.subr.mxu0 0.0
    %286 = vmatpush1.msra.mxu0 0.0
    %287 = vmatprep.subr.mxu0 0.0
    %288 = vmatpush1.msra.mxu0 0.0
    %289 = vmatprep.subr.mxu0 0.0
    %290 = vmatpush1.msra.mxu0 0.0
    %291 = vmatprep.subr.mxu0 0.0
    %292 = vmatpush1.msra.mxu0 0.0
    %293 = vmatprep.subr.mxu0 0.0
    %294 = vmatpush1.msra.mxu0 0.0
    %295 = vmatprep.subr.mxu0 0.0
    %296 = vmatpush1.msra.mxu0 0.0
    %297 = vmatprep.subr.mxu0 0.0
    %298 = vmatpush1.msra.mxu0 0.0
    %299 = vmatprep.subr.mxu0 0.0
    %300 = vmatpush1.msra.mxu0 0.0
    %301 = vmatprep.subr.mxu0 0.0
    %302 = vmatpush1.msra.mxu0 0.0
    %303 = vmatprep.subr.mxu0 0.0
    %304 = vmatpush1.msra.mxu0 0.0
    %305 = vmatprep.subr.mxu0 0.0
    %306 = vmatpush1.msra.mxu0 0.0
    %307 = vmatprep.subr.mxu0 0.0
    %308 = vmatpush1.msra.mxu0 0.0
    %309 = vmatprep.subr.mxu0 0.0
    %310 = vmatpush1.msra.mxu0 0.0
    %311 = vmatprep.mubr.f32.mxu0 0.0
    %312 = vmatmul.mubr.f32.gmra.mrb[0].mxu0 %v242
    %v313 = vpop.f32.mrb[0].mxu0
    %v314 = vadd.f32 0.0, %v313
    %v315 = vpop.f32.mrb[0].mxu0
    %316 = vmatprep.mubr.f32.mxu0 0.0
    %317 = vmatmul.mubr.f32.gmra.mrb[0].mxu0 %v245
    %v318 = vpop.f32.mrb[0].mxu0
    %v319 = vadd.f32 0.0, %v318
    %v320 = vpop.f32.mrb[0].mxu0
    %321 = vdwg.mxu0
    %322 = vst.msk [vmem:[#allocation2] sm:$0xff] %vm126, %v314
    %323 = vst.msk [vmem:[#allocation2 + $0x8] sm:$0xff] %vm126, %v319
    %324 = vrot.lane.b32.xlu0 %v118, 120
    %v325 = vpop.permute.xlu0 %324
    %326 = vrot.lane.b32.xlu0 %v119, 120
    %v327 = vpop.permute.xlu0 %326
    %328 = vrot.lane.b32.xlu0 %v110, 88
    %v329 = vpop.permute.xlu0 %328
    %330 = vrot.lane.b32.xlu0 %v115, 88
    %v331 = vpop.permute.xlu0 %330
    %v332 = vsel %vm126, %v325, 0
    %v334 = vsel %vm126, %v327, 0
    %v336 = vsel %vm126, %v329, 0
    %v338 = vsel %vm126, %v331, 0
    %340 = vmatprep.subr.mxu0 0.0
    %341 = vmatpush1.xpose.msra.mxu0 %v336
    %342 = vmatprep.subr.mxu0 0.0
    %343 = vmatpush1.xpose.msra.mxu0 %v338
    %344 = vmatprep.subr.mxu0 0.0
    %345 = vmatpush1.xpose.msra.mxu0 0.0
    %346 = vmatprep.subr.mxu0 0.0
    %347 = vmatpush1.xpose.msra.mxu0 0.0
    %348 = vmatprep.subr.mxu0 0.0
    %349 = vmatpush1.xpose.msra.mxu0 0.0
    %350 = vmatprep.subr.mxu0 0.0
    %351 = vmatpush1.xpose.msra.mxu0 0.0
    %352 = vmatprep.subr.mxu0 0.0
    %353 = vmatpush1.xpose.msra.mxu0 0.0
    %354 = vmatprep.subr.mxu0 0.0
    %355 = vmatpush1.xpose.msra.mxu0 0.0
    %356 = vmatprep.subr.mxu0 0.0
    %357 = vmatpush1.xpose.msra.mxu0 0.0
    %358 = vmatprep.subr.mxu0 0.0
    %359 = vmatpush1.xpose.msra.mxu0 0.0
    %360 = vmatprep.subr.mxu0 0.0
    %361 = vmatpush1.xpose.msra.mxu0 0.0
    %362 = vmatprep.subr.mxu0 0.0
    %363 = vmatpush1.xpose.msra.mxu0 0.0
    %364 = vmatprep.subr.mxu0 0.0
    %365 = vmatpush1.xpose.msra.mxu0 0.0
    %366 = vmatprep.subr.mxu0 0.0
    %367 = vmatpush1.xpose.msra.mxu0 0.0
    %368 = vmatprep.subr.mxu0 0.0
    %369 = vmatpush1.xpose.msra.mxu0 0.0
    %370 = vmatprep.subr.mxu0 0.0
    %371 = vmatpush1.xpose.msra.mxu0 0.0
    %372 = vmatprep.subr.mxu0 0.0
    %373 = vmatpush1.xpose.msra.mxu0 0.0
    %374 = vmatprep.subr.mxu0 0.0
    %375 = vmatpush1.xpose.msra.mxu0 0.0
    %376 = vmatprep.subr.mxu0 0.0
    %377 = vmatpush1.xpose.msra.mxu0 0.0
    %378 = vmatprep.subr.mxu0 0.0
    %379 = vmatpush1.xpose.msra.mxu0 0.0
    %380 = vmatprep.subr.mxu0 0.0
    %381 = vmatpush1.xpose.msra.mxu0 0.0
    %382 = vmatprep.subr.mxu0 0.0
    %383 = vmatpush1.xpose.msra.mxu0 0.0
    %384 = vmatprep.subr.mxu0 0.0
    %385 = vmatpush1.xpose.msra.mxu0 0.0
    %386 = vmatprep.subr.mxu0 0.0
    %387 = vmatpush1.xpose.msra.mxu0 0.0
    %388 = vmatprep.subr.mxu0 0.0
    %389 = vmatpush1.xpose.msra.mxu0 0.0
    %390 = vmatprep.subr.mxu0 0.0
    %391 = vmatpush1.xpose.msra.mxu0 0.0
    %392 = vmatprep.subr.mxu0 0.0
    %393 = vmatpush1.xpose.msra.mxu0 0.0
    %394 = vmatprep.subr.mxu0 0.0
    %395 = vmatpush1.xpose.msra.mxu0 0.0
    %396 = vmatprep.subr.mxu0 0.0
    %397 = vmatpush1.xpose.msra.mxu0 0.0
    %398 = vmatprep.subr.mxu0 0.0
    %399 = vmatpush1.xpose.msra.mxu0 0.0
    %400 = vmatprep.subr.mxu0 0.0
    %401 = vmatpush1.xpose.msra.mxu0 0.0
    %402 = vmatprep.subr.mxu0 0.0
    %403 = vmatpush1.xpose.msra.mxu0 0.0
    %404 = vmatprep.mubr.f32.mxu0 0.0
    %405 = vmatmul.mubr.f32.gmra.mrb[0].mxu0 %v332
    %v406 = vpop.f32.mrb[0].mxu0
    %v407 = vadd.f32 %v29, %v406
    %v408 = vpop.f32.mrb[0].mxu0
    %409 = vmatprep.mubr.f32.mxu0 0.0
    %410 = vmatmul.mubr.f32.gmra.mrb[0].mxu0 %v334
    %v411 = vpop.f32.mrb[0].mxu0
    %v412 = vadd.f32 %v30, %v411
    %v413 = vpop.f32.mrb[0].mxu0
    %414 = vdwg.mxu0
    %v415 = vsel %vm212, %v407, -inf
    %416 = vmax.xlane.f32.xlu0 %v415
    %v417 = vpop.xlane.xlu0 %416
    %v418 = vsel %vm212, %v412, -inf
    %419 = vmax.xlane.f32.xlu0 %v418
    %v420 = vpop.xlane.xlu0 %419
    %v421 = vsub.f32 %v407, %v417
    %v422 = vsub.f32 %v412, %v420
    %v423 = vmul.f32 %v421, 1.442695
    %v424 = vpow.pop %v423
    %v425 = vmul.f32 %v422, 1.442695
    %v426 = vpow.pop %v425
    %v427 = vsel %vm212, %v424, 0.0
    %428 = vadd.xlane.f32.xlu0 %v427
    %v429 = vpop.xlane.xlu0 %428
    %v430 = vsel %vm212, %v426, 0.0
    %431 = vadd.xlane.f32.xlu0 %v430
    %v432 = vpop.xlane.xlu0 %431
    %v433 = vrcp.pop %v429
    %v434 = vmul.f32 %v424, %v433
    %v435 = vrcp.pop %v432
    %v436 = vmul.f32 %v426, %v435
    %437 = vrot.lane.b32.xlu0 %v110, 56
    %v438 = vpop.permute.xlu0 %437
    %439 = vrot.lane.b32.xlu0 %v115, 56
    %v440 = vpop.permute.xlu0 %439
    %v444 = vsel %vm212, %v434, 0
    %v447 = vsel %vm212, %v436, 0
    %449 = vmatprep.subr.mxu0 0.0
    %450 = vmatpush1.msra.mxu0 %v438
    %451 = vmatprep.subr.mxu0 0.0
    %452 = vmatpush1.msra.mxu0 %v440
    %453 = vmatprep.subr.mxu0 0.0
    %454 = vmatpush1.msra.mxu0 0.0
    %455 = vmatprep.subr.mxu0 0.0
    %456 = vmatpush1.msra.mxu0 0.0
    %457 = vmatprep.subr.mxu0 0.0
    %458 = vmatpush1.msra.mxu0 0.0
    %459 = vmatprep.subr.mxu0 0.0
    %460 = vmatpush1.msra.mxu0 0.0
    %461 = vmatprep.subr.mxu0 0.0
    %462 = vmatpush1.msra.mxu0 0.0
    %463 = vmatprep.subr.mxu0 0.0
    %464 = vmatpush1.msra.mxu0 0.0
    %465 = vmatprep.subr.mxu0 0.0
    %466 = vmatpush1.msra.mxu0 0.0
    %467 = vmatprep.subr.mxu0 0.0
    %468 = vmatpush1.msra.mxu0 0.0
    %469 = vmatprep.subr.mxu0 0.0
    %470 = vmatpush1.msra.mxu0 0.0
    %471 = vmatprep.subr.mxu0 0.0
    %472 = vmatpush1.msra.mxu0 0.0
    %473 = vmatprep.subr.mxu0 0.0
    %474 = vmatpush1.msra.mxu0 0.0
    %475 = vmatprep.subr.mxu0 0.0
    %476 = vmatpush1.msra.mxu0 0.0
    %477 = vmatprep.subr.mxu0 0.0
    %478 = vmatpush1.msra.mxu0 0.0
    %479 = vmatprep.subr.mxu0 0.0
    %480 = vmatpush1.msra.mxu0 0.0
    %481 = vmatprep.subr.mxu0 0.0
    %482 = vmatpush1.msra.mxu0 0.0
    %483 = vmatprep.subr.mxu0 0.0
    %484 = vmatpush1.msra.mxu0 0.0
    %485 = vmatprep.subr.mxu0 0.0
    %486 = vmatpush1.msra.mxu0 0.0
    %487 = vmatprep.subr.mxu0 0.0
    %488 = vmatpush1.msra.mxu0 0.0
    %489 = vmatprep.subr.mxu0 0.0
    %490 = vmatpush1.msra.mxu0 0.0
    %491 = vmatprep.subr.mxu0 0.0
    %492 = vmatpush1.msra.mxu0 0.0
    %493 = vmatprep.subr.mxu0 0.0
    %494 = vmatpush1.msra.mxu0 0.0
    %495 = vmatprep.subr.mxu0 0.0
    %496 = vmatpush1.msra.mxu0 0.0
    %497 = vmatprep.subr.mxu0 0.0
    %498 = vmatpush1.msra.mxu0 0.0
    %499 = vmatprep.subr.mxu0 0.0
    %500 = vmatpush1.msra.mxu0 0.0
    %501 = vmatprep.subr.mxu0 0.0
    %502 = vmatpush1.msra.mxu0 0.0
    %503 = vmatprep.subr.mxu0 0.0
    %504 = vmatpush1.msra.mxu0 0.0
    %505 = vmatprep.subr.mxu0 0.0
    %506 = vmatpush1.msra.mxu0 0.0
    %507 = vmatprep.subr.mxu0 0.0
    %508 = vmatpush1.msra.mxu0 0.0
    %509 = vmatprep.subr.mxu0 0.0
    %510 = vmatpush1.msra.mxu0 0.0
    %511 = vmatprep.subr.mxu0 0.0
    %512 = vmatpush1.msra.mxu0 0.0
    %513 = vmatprep.mubr.f32.mxu0 0.0
    %514 = vmatmul.mubr.f32.gmra.mrb[0].mxu0 %v444
    %v515 = vpop.f32.mrb[0].mxu0
    %v516 = vadd.f32 0.0, %v515
    %v517 = vpop.f32.mrb[0].mxu0
    %518 = vmatprep.mubr.f32.mxu0 0.0
    %519 = vmatmul.mubr.f32.gmra.mrb[0].mxu0 %v447
    %v520 = vpop.f32.mrb[0].mxu0
    %v521 = vadd.f32 0.0, %v520
    %v522 = vpop.f32.mrb[0].mxu0
    %523 = vdwg.mxu0
    %526 = vrot.lane.b32.xlu0 %v516, 8
    %v527 = vpop.permute.xlu0 %526
    %528 = vrot.lane.b32.xlu0 %v521, 8
    %v529 = vpop.permute.xlu0 %528
    %vm532 = vcmask 130112
    %533 = vst.msk [vmem:[#allocation2] sm:$0xff] %vm532, %v527
    %534 = vst.msk [vmem:[#allocation2 + $0x8] sm:$0xff] %vm532, %v529
    %535 = vrot.lane.b32.xlu0 %v118, 112
    %v536 = vpop.permute.xlu0 %535
    %537 = vrot.lane.b32.xlu0 %v119, 112
    %v538 = vpop.permute.xlu0 %537
    %539 = vrot.lane.b32.xlu0 %v110, 80
    %v540 = vpop.permute.xlu0 %539
    %541 = vrot.lane.b32.xlu0 %v115, 80
    %v542 = vpop.permute.xlu0 %541
    %v543 = vsel %vm126, %v536, 0
    %v545 = vsel %vm126, %v538, 0
    %v547 = vsel %vm126, %v540, 0
    %v549 = vsel %vm126, %v542, 0
    %551 = vmatprep.subr.mxu0 0.0
    %552 = vmatpush1.xpose.msra.mxu0 %v547
    %553 = vmatprep.subr.mxu0 0.0
    %554 = vmatpush1.xpose.msra.mxu0 %v549
    %555 = vmatprep.subr.mxu0 0.0
    %556 = vmatpush1.xpose.msra.mxu0 0.0
    %557 = vmatprep.subr.mxu0 0.0
    %558 = vmatpush1.xpose.msra.mxu0 0.0
    %559 = vmatprep.subr.mxu0 0.0
    %560 = vmatpush1.xpose.msra.mxu0 0.0
    %561 = vmatprep.subr.mxu0 0.0
    %562 = vmatpush1.xpose.msra.mxu0 0.0
    %563 = vmatprep.subr.mxu0 0.0
    %564 = vmatpush1.xpose.msra.mxu0 0.0
    %565 = vmatprep.subr.mxu0 0.0
    %566 = vmatpush1.xpose.msra.mxu0 0.0
    %567 = vmatprep.subr.mxu0 0.0
    %568 = vmatpush1.xpose.msra.mxu0 0.0
    %569 = vmatprep.subr.mxu0 0.0
    %570 = vmatpush1.xpose.msra.mxu0 0.0
    %571 = vmatprep.subr.mxu0 0.0
    %572 = vmatpush1.xpose.msra.mxu0 0.0
    %573 = vmatprep.subr.mxu0 0.0
    %574 = vmatpush1.xpose.msra.mxu0 0.0
    %575 = vmatprep.subr.mxu0 0.0
    %576 = vmatpush1.xpose.msra.mxu0 0.0
    %577 = vmatprep.subr.mxu0 0.0
    %578 = vmatpush1.xpose.msra.mxu0 0.0
    %579 = vmatprep.subr.mxu0 0.0
    %580 = vmatpush1.xpose.msra.mxu0 0.0
    %581 = vmatprep.subr.mxu0 0.0
    %582 = vmatpush1.xpose.msra.mxu0 0.0
    %583 = vmatprep.subr.mxu0 0.0
    %584 = vmatpush1.xpose.msra.mxu0 0.0
    %585 = vmatprep.subr.mxu0 0.0
    %586 = vmatpush1.xpose.msra.mxu0 0.0
    %587 = vmatprep.subr.mxu0 0.0
    %588 = vmatpush1.xpose.msra.mxu0 0.0
    %589 = vmatprep.subr.mxu0 0.0
    %590 = vmatpush1.xpose.msra.mxu0 0.0
    %591 = vmatprep.subr.mxu0 0.0
    %592 = vmatpush1.xpose.msra.mxu0 0.0
    %593 = vmatprep.subr.mxu0 0.0
    %594 = vmatpush1.xpose.msra.mxu0 0.0
    %595 = vmatprep.subr.mxu0 0.0
    %596 = vmatpush1.xpose.msra.mxu0 0.0
    %597 = vmatprep.subr.mxu0 0.0
    %598 = vmatpush1.xpose.msra.mxu0 0.0
    %599 = vmatprep.subr.mxu0 0.0
    %600 = vmatpush1.xpose.msra.mxu0 0.0
    %601 = vmatprep.subr.mxu0 0.0
    %602 = vmatpush1.xpose.msra.mxu0 0.0
    %603 = vmatprep.subr.mxu0 0.0
    %604 = vmatpush1.xpose.msra.mxu0 0.0
    %605 = vmatprep.subr.mxu0 0.0
    %606 = vmatpush1.xpose.msra.mxu0 0.0
    %607 = vmatprep.subr.mxu0 0.0
    %608 = vmatpush1.xpose.msra.mxu0 0.0
    %609 = vmatprep.subr.mxu0 0.0
    %610 = vmatpush1.xpose.msra.mxu0 0.0
    %611 = vmatprep.subr.mxu0 0.0
    %612 = vmatpush1.xpose.msra.mxu0 0.0
    %613 = vmatprep.subr.mxu0 0.0
    %614 = vmatpush1.xpose.msra.mxu0 0.0
    %615 = vmatprep.mubr.f32.mxu0 0.0
    %616 = vmatmul.mubr.f32.gmra.mrb[0].mxu0 %v543
    %v617 = vpop.f32.mrb[0].mxu0
    %v618 = vadd.f32 %v29, %v617
    %v619 = vpop.f32.mrb[0].mxu0
    %620 = vmatprep.mubr.f32.mxu0 0.0
    %621 = vmatmul.mubr.f32.gmra.mrb[0].mxu0 %v545
    %v622 = vpop.f32.mrb[0].mxu0
    %v623 = vadd.f32 %v30, %v622
    %v624 = vpop.f32.mrb[0].mxu0
    %625 = vdwg.mxu0
    %v626 = vsel %vm212, %v618, -inf
    %627 = vmax.xlane.f32.xlu0 %v626
    %v628 = vpop.xlane.xlu0 %627
    %v629 = vsel %vm212, %v623, -inf
    %630 = vmax.xlane.f32.xlu0 %v629
    %v631 = vpop.xlane.xlu0 %630
    %v632 = vsub.f32 %v618, %v628
    %v633 = vsub.f32 %v623, %v631
    %v634 = vmul.f32 %v632, 1.442695
    %v635 = vpow.pop %v634
    %v636 = vmul.f32 %v633, 1.442695
    %v637 = vpow.pop %v636
    %v638 = vsel %vm212, %v635, 0.0
    %639 = vadd.xlane.f32.xlu0 %v638
    %v640 = vpop.xlane.xlu0 %639
    %v641 = vsel %vm212, %v637, 0.0
    %642 = vadd.xlane.f32.xlu0 %v641
    %v643 = vpop.xlane.xlu0 %642
    %v644 = vrcp.pop %v640
    %v645 = vmul.f32 %v635, %v644
    %v646 = vrcp.pop %v643
    %v647 = vmul.f32 %v637, %v646
    %648 = vrot.lane.b32.xlu0 %v110, 48
    %v649 = vpop.permute.xlu0 %648
    %650 = vrot.lane.b32.xlu0 %v115, 48
    %v651 = vpop.permute.xlu0 %650
    %v655 = vsel %vm212, %v645, 0
    %v658 = vsel %vm212, %v647, 0
    %660 = vmatprep.subr.mxu0 0.0
    %661 = vmatpush1.msra.mxu0 %v649
    %662 = vmatprep.subr.mxu0 0.0
    %663 = vmatpush1.msra.mxu0 %v651
    %664 = vmatprep.subr.mxu0 0.0
    %665 = vmatpush1.msra.mxu0 0.0
    %666 = vmatprep.subr.mxu0 0.0
    %667 = vmatpush1.msra.mxu0 0.0
    %668 = vmatprep.subr.mxu0 0.0
    %669 = vmatpush1.msra.mxu0 0.0
    %670 = vmatprep.subr.mxu0 0.0
    %671 = vmatpush1.msra.mxu0 0.0
    %672 = vmatprep.subr.mxu0 0.0
    %673 = vmatpush1.msra.mxu0 0.0
    %674 = vmatprep.subr.mxu0 0.0
    %675 = vmatpush1.msra.mxu0 0.0
    %676 = vmatprep.subr.mxu0 0.0
    %677 = vmatpush1.msra.mxu0 0.0
    %678 = vmatprep.subr.mxu0 0.0
    %679 = vmatpush1.msra.mxu0 0.0
    %680 = vmatprep.subr.mxu0 0.0
    %681 = vmatpush1.msra.mxu0 0.0
    %682 = vmatprep.subr.mxu0 0.0
    %683 = vmatpush1.msra.mxu0 0.0
    %684 = vmatprep.subr.mxu0 0.0
    %685 = vmatpush1.msra.mxu0 0.0
    %686 = vmatprep.subr.mxu0 0.0
    %687 = vmatpush1.msra.mxu0 0.0
    %688 = vmatprep.subr.mxu0 0.0
    %689 = vmatpush1.msra.mxu0 0.0
    %690 = vmatprep.subr.mxu0 0.0
    %691 = vmatpush1.msra.mxu0 0.0
    %692 = vmatprep.subr.mxu0 0.0
    %693 = vmatpush1.msra.mxu0 0.0
    %694 = vmatprep.subr.mxu0 0.0
    %695 = vmatpush1.msra.mxu0 0.0
    %696 = vmatprep.subr.mxu0 0.0
    %697 = vmatpush1.msra.mxu0 0.0
    %698 = vmatprep.subr.mxu0 0.0
    %699 = vmatpush1.msra.mxu0 0.0
    %700 = vmatprep.subr.mxu0 0.0
    %701 = vmatpush1.msra.mxu0 0.0
    %702 = vmatprep.subr.mxu0 0.0
    %703 = vmatpush1.msra.mxu0 0.0
    %704 = vmatprep.subr.mxu0 0.0
    %705 = vmatpush1.msra.mxu0 0.0
    %706 = vmatprep.subr.mxu0 0.0
    %707 = vmatpush1.msra.mxu0 0.0
    %708 = vmatprep.subr.mxu0 0.0
    %709 = vmatpush1.msra.mxu0 0.0
    %710 = vmatprep.subr.mxu0 0.0
    %711 = vmatpush1.msra.mxu0 0.0
    %712 = vmatprep.subr.mxu0 0.0
    %713 = vmatpush1.msra.mxu0 0.0
    %714 = vmatprep.subr.mxu0 0.0
    %715 = vmatpush1.msra.mxu0 0.0
    %716 = vmatprep.subr.mxu0 0.0
    %717 = vmatpush1.msra.mxu0 0.0
    %718 = vmatprep.subr.mxu0 0.0
    %719 = vmatpush1.msra.mxu0 0.0
    %720 = vmatprep.subr.mxu0 0.0
    %721 = vmatpush1.msra.mxu0 0.0
    %722 = vmatprep.subr.mxu0 0.0
    %723 = vmatpush1.msra.mxu0 0.0
    %724 = vmatprep.mubr.f32.mxu0 0.0
    %725 = vmatmul.mubr.f32.gmra.mrb[0].mxu0 %v655
    %v726 = vpop.f32.mrb[0].mxu0
    %v727 = vadd.f32 0.0, %v726
    %v728 = vpop.f32.mrb[0].mxu0
    %729 = vmatprep.mubr.f32.mxu0 0.0
    %730 = vmatmul.mubr.f32.gmra.mrb[0].mxu0 %v658
    %v731 = vpop.f32.mrb[0].mxu0
    %v732 = vadd.f32 0.0, %v731
    %v733 = vpop.f32.mrb[0].mxu0
    %734 = vdwg.mxu0
    %737 = vrot.lane.b32.xlu0 %v727, 16
    %v738 = vpop.permute.xlu0 %737
    %739 = vrot.lane.b32.xlu0 %v732, 16
    %v740 = vpop.permute.xlu0 %739
    %vm743 = vcmask 195712
    %744 = vst.msk [vmem:[#allocation2] sm:$0xff] %vm743, %v738
    %745 = vst.msk [vmem:[#allocation2 + $0x8] sm:$0xff] %vm743, %v740
    %746 = vrot.lane.b32.xlu0 %v118, 104
    %v747 = vpop.permute.xlu0 %746
    %748 = vrot.lane.b32.xlu0 %v119, 104
    %v749 = vpop.permute.xlu0 %748
    %750 = vrot.lane.b32.xlu0 %v110, 72
    %v751 = vpop.permute.xlu0 %750
    %752 = vrot.lane.b32.xlu0 %v115, 72
    %v753 = vpop.permute.xlu0 %752
    %v754 = vsel %vm126, %v747, 0
    %v756 = vsel %vm126, %v749, 0
    %v758 = vsel %vm126, %v751, 0
    %v760 = vsel %vm126, %v753, 0
    %762 = vmatprep.subr.mxu0 0.0
    %763 = vmatpush1.xpose.msra.mxu0 %v758
    %764 = vmatprep.subr.mxu0 0.0
    %765 = vmatpush1.xpose.msra.mxu0 %v760
    %766 = vmatprep.subr.mxu0 0.0
    %767 = vmatpush1.xpose.msra.mxu0 0.0
    %768 = vmatprep.subr.mxu0 0.0
    %769 = vmatpush1.xpose.msra.mxu0 0.0
    %770 = vmatprep.subr.mxu0 0.0
    %771 = vmatpush1.xpose.msra.mxu0 0.0
    %772 = vmatprep.subr.mxu0 0.0
    %773 = vmatpush1.xpose.msra.mxu0 0.0
    %774 = vmatprep.subr.mxu0 0.0
    %775 = vmatpush1.xpose.msra.mxu0 0.0
    %776 = vmatprep.subr.mxu0 0.0
    %777 = vmatpush1.xpose.msra.mxu0 0.0
    %778 = vmatprep.subr.mxu0 0.0
    %779 = vmatpush1.xpose.msra.mxu0 0.0
    %780 = vmatprep.subr.mxu0 0.0
    %781 = vmatpush1.xpose.msra.mxu0 0.0
    %782 = vmatprep.subr.mxu0 0.0
    %783 = vmatpush1.xpose.msra.mxu0 0.0
    %784 = vmatprep.subr.mxu0 0.0
    %785 = vmatpush1.xpose.msra.mxu0 0.0
    %786 = vmatprep.subr.mxu0 0.0
    %787 = vmatpush1.xpose.msra.mxu0 0.0
    %788 = vmatprep.subr.mxu0 0.0
    %789 = vmatpush1.xpose.msra.mxu0 0.0
    %790 = vmatprep.subr.mxu0 0.0
    %791 = vmatpush1.xpose.msra.mxu0 0.0
    %792 = vmatprep.subr.mxu0 0.0
    %793 = vmatpush1.xpose.msra.mxu0 0.0
    %794 = vmatprep.subr.mxu0 0.0
    %795 = vmatpush1.xpose.msra.mxu0 0.0
    %796 = vmatprep.subr.mxu0 0.0
    %797 = vmatpush1.xpose.msra.mxu0 0.0
    %798 = vmatprep.subr.mxu0 0.0
    %799 = vmatpush1.xpose.msra.mxu0 0.0
    %800 = vmatprep.subr.mxu0 0.0
    %801 = vmatpush1.xpose.msra.mxu0 0.0
    %802 = vmatprep.subr.mxu0 0.0
    %803 = vmatpush1.xpose.msra.mxu0 0.0
    %804 = vmatprep.subr.mxu0 0.0
    %805 = vmatpush1.xpose.msra.mxu0 0.0
    %806 = vmatprep.subr.mxu0 0.0
    %807 = vmatpush1.xpose.msra.mxu0 0.0
    %808 = vmatprep.subr.mxu0 0.0
    %809 = vmatpush1.xpose.msra.mxu0 0.0
    %810 = vmatprep.subr.mxu0 0.0
    %811 = vmatpush1.xpose.msra.mxu0 0.0
    %812 = vmatprep.subr.mxu0 0.0
    %813 = vmatpush1.xpose.msra.mxu0 0.0
    %814 = vmatprep.subr.mxu0 0.0
    %815 = vmatpush1.xpose.msra.mxu0 0.0
    %816 = vmatprep.subr.mxu0 0.0
    %817 = vmatpush1.xpose.msra.mxu0 0.0
    %818 = vmatprep.subr.mxu0 0.0
    %819 = vmatpush1.xpose.msra.mxu0 0.0
    %820 = vmatprep.subr.mxu0 0.0
    %821 = vmatpush1.xpose.msra.mxu0 0.0
    %822 = vmatprep.subr.mxu0 0.0
    %823 = vmatpush1.xpose.msra.mxu0 0.0
    %824 = vmatprep.subr.mxu0 0.0
    %825 = vmatpush1.xpose.msra.mxu0 0.0
    %826 = vmatprep.mubr.f32.mxu0 0.0
    %827 = vmatmul.mubr.f32.gmra.mrb[0].mxu0 %v754
    %v828 = vpop.f32.mrb[0].mxu0
    %v829 = vadd.f32 %v29, %v828
    %v830 = vpop.f32.mrb[0].mxu0
    %831 = vmatprep.mubr.f32.mxu0 0.0
    %832 = vmatmul.mubr.f32.gmra.mrb[0].mxu0 %v756
    %v833 = vpop.f32.mrb[0].mxu0
    %v834 = vadd.f32 %v30, %v833
    %v835 = vpop.f32.mrb[0].mxu0
    %836 = vdwg.mxu0
    %v837 = vsel %vm212, %v829, -inf
    %838 = vmax.xlane.f32.xlu0 %v837
    %v839 = vpop.xlane.xlu0 %838
    %v840 = vsel %vm212, %v834, -inf
    %841 = vmax.xlane.f32.xlu0 %v840
    %v842 = vpop.xlane.xlu0 %841
    %v843 = vsub.f32 %v829, %v839
    %v844 = vsub.f32 %v834, %v842
    %v845 = vmul.f32 %v843, 1.442695
    %v846 = vpow.pop %v845
    %v847 = vmul.f32 %v844, 1.442695
    %v848 = vpow.pop %v847
    %v849 = vsel %vm212, %v846, 0.0
    %850 = vadd.xlane.f32.xlu0 %v849
    %v851 = vpop.xlane.xlu0 %850
    %v852 = vsel %vm212, %v848, 0.0
    %853 = vadd.xlane.f32.xlu0 %v852
    %v854 = vpop.xlane.xlu0 %853
    %v855 = vrcp.pop %v851
    %v856 = vmul.f32 %v846, %v855
    %v857 = vrcp.pop %v854
    %v858 = vmul.f32 %v848, %v857
    %859 = vrot.lane.b32.xlu0 %v110, 40
    %v860 = vpop.permute.xlu0 %859
    %861 = vrot.lane.b32.xlu0 %v115, 40
    %v862 = vpop.permute.xlu0 %861
    %v866 = vsel %vm212, %v856, 0
    %v869 = vsel %vm212, %v858, 0
    %871 = vmatprep.subr.mxu0 0.0
    %872 = vmatpush1.msra.mxu0 %v860
    %873 = vmatprep.subr.mxu0 0.0
    %874 = vmatpush1.msra.mxu0 %v862
    %875 = vmatprep.subr.mxu0 0.0
    %876 = vmatpush1.msra.mxu0 0.0
    %877 = vmatprep.subr.mxu0 0.0
    %878 = vmatpush1.msra.mxu0 0.0
    %879 = vmatprep.subr.mxu0 0.0
    %880 = vmatpush1.msra.mxu0 0.0
    %881 = vmatprep.subr.mxu0 0.0
    %882 = vmatpush1.msra.mxu0 0.0
    %883 = vmatprep.subr.mxu0 0.0
    %884 = vmatpush1.msra.mxu0 0.0
    %885 = vmatprep.subr.mxu0 0.0
    %886 = vmatpush1.msra.mxu0 0.0
    %887 = vmatprep.subr.mxu0 0.0
    %888 = vmatpush1.msra.mxu0 0.0
    %889 = vmatprep.subr.mxu0 0.0
    %890 = vmatpush1.msra.mxu0 0.0
    %891 = vmatprep.subr.mxu0 0.0
    %892 = vmatpush1.msra.mxu0 0.0
    %893 = vmatprep.subr.mxu0 0.0
    %894 = vmatpush1.msra.mxu0 0.0
    %895 = vmatprep.subr.mxu0 0.0
    %896 = vmatpush1.msra.mxu0 0.0
    %897 = vmatprep.subr.mxu0 0.0
    %898 = vmatpush1.msra.mxu0 0.0
    %899 = vmatprep.subr.mxu0 0.0
    %900 = vmatpush1.msra.mxu0 0.0
    %901 = vmatprep.subr.mxu0 0.0
    %902 = vmatpush1.msra.mxu0 0.0
    %903 = vmatprep.subr.mxu0 0.0
    %904 = vmatpush1.msra.mxu0 0.0
    %905 = vmatprep.subr.mxu0 0.0
    %906 = vmatpush1.msra.mxu0 0.0
    %907 = vmatprep.subr.mxu0 0.0
    %908 = vmatpush1.msra.mxu0 0.0
    %909 = vmatprep.subr.mxu0 0.0
    %910 = vmatpush1.msra.mxu0 0.0
    %911 = vmatprep.subr.mxu0 0.0
    %912 = vmatpush1.msra.mxu0 0.0
    %913 = vmatprep.subr.mxu0 0.0
    %914 = vmatpush1.msra.mxu0 0.0
    %915 = vmatprep.subr.mxu0 0.0
    %916 = vmatpush1.msra.mxu0 0.0
    %917 = vmatprep.subr.mxu0 0.0
    %918 = vmatpush1.msra.mxu0 0.0
    %919 = vmatprep.subr.mxu0 0.0
    %920 = vmatpush1.msra.mxu0 0.0
    %921 = vmatprep.subr.mxu0 0.0
    %922 = vmatpush1.msra.mxu0 0.0
    %923 = vmatprep.subr.mxu0 0.0
    %924 = vmatpush1.msra.mxu0 0.0
    %925 = vmatprep.subr.mxu0 0.0
    %926 = vmatpush1.msra.mxu0 0.0
    %927 = vmatprep.subr.mxu0 0.0
    %928 = vmatpush1.msra.mxu0 0.0
    %929 = vmatprep.subr.mxu0 0.0
    %930 = vmatpush1.msra.mxu0 0.0
    %931 = vmatprep.subr.mxu0 0.0
    %932 = vmatpush1.msra.mxu0 0.0
    %933 = vmatprep.subr.mxu0 0.0
    %934 = vmatpush1.msra.mxu0 0.0
    %935 = vmatprep.mubr.f32.mxu0 0.0
    %936 = vmatmul.mubr.f32.gmra.mrb[0].mxu0 %v866
    %v937 = vpop.f32.mrb[0].mxu0
    %v938 = vadd.f32 0.0, %v937
    %v939 = vpop.f32.mrb[0].mxu0
    %940 = vmatprep.mubr.f32.mxu0 0.0
    %941 = vmatmul.mubr.f32.gmra.mrb[0].mxu0 %v869
    %v942 = vpop.f32.mrb[0].mxu0
    %v943 = vadd.f32 0.0, %v942
    %v944 = vpop.f32.mrb[0].mxu0
    %945 = vdwg.mxu0
    %948 = vrot.lane.b32.xlu0 %v938, 24
    %v949 = vpop.permute.xlu0 %948
    %950 = vrot.lane.b32.xlu0 %v943, 24
    %v951 = vpop.permute.xlu0 %950
    %vm954 = vcmask 261312
    %955 = vst.msk [vmem:[#allocation2] sm:$0xff] %vm954, %v949
    %956 = vst.msk [vmem:[#allocation2 + $0x8] sm:$0xff] %vm954, %v951
    %v957 = vld [vmem:[#allocation2] sm:$0xff]
    %v958 = vld [vmem:[#allocation2 + $0x8] sm:$0xff]
    %v959 = vld [vmem:[%s3] sm:$0xff]
    %v960 = vld [vmem:[%s3 + $0x8] sm:$0xff]
    %v961 = vld [vmem:[%s3 + $0x10] sm:$0xff]
    %v962 = vld [vmem:[%s3 + $0x18] sm:$0xff]
    %v964 = vsel %vm36, %v957, 0
    %v967 = vsel %vm36, %v958, 0
    %969 = vmatprep.subr.mxu0 0.0
    %970 = vmatpush1.msra.mxu0 %v959
    %971 = vmatprep.subr.mxu0 0.0
    %972 = vmatpush1.msra.mxu0 %v960
    %973 = vmatprep.subr.mxu0 0.0
    %974 = vmatpush1.msra.mxu0 %v961
    %975 = vmatprep.subr.mxu0 0.0
    %976 = vmatpush1.msra.mxu0 %v962
    %977 = vmatprep.subr.mxu0 0.0
    %978 = vmatpush1.msra.mxu0 0.0
    %979 = vmatprep.subr.mxu0 0.0
    %980 = vmatpush1.msra.mxu0 0.0
    %981 = vmatprep.subr.mxu0 0.0
    %982 = vmatpush1.msra.mxu0 0.0
    %983 = vmatprep.subr.mxu0 0.0
    %984 = vmatpush1.msra.mxu0 0.0
    %985 = vmatprep.subr.mxu0 0.0
    %986 = vmatpush1.msra.mxu0 0.0
    %987 = vmatprep.subr.mxu0 0.0
    %988 = vmatpush1.msra.mxu0 0.0
    %989 = vmatprep.subr.mxu0 0.0
    %990 = vmatpush1.msra.mxu0 0.0
    %991 = vmatprep.subr.mxu0 0.0
    %992 = vmatpush1.msra.mxu0 0.0
    %993 = vmatprep.subr.mxu0 0.0
    %994 = vmatpush1.msra.mxu0 0.0
    %995 = vmatprep.subr.mxu0 0.0
    %996 = vmatpush1.msra.mxu0 0.0
    %997 = vmatprep.subr.mxu0 0.0
    %998 = vmatpush1.msra.mxu0 0.0
    %999 = vmatprep.subr.mxu0 0.0
    %1000 = vmatpush1.msra.mxu0 0.0
    %1001 = vmatprep.subr.mxu0 0.0
    %1002 = vmatpush1.msra.mxu0 0.0
    %1003 = vmatprep.subr.mxu0 0.0
    %1004 = vmatpush1.msra.mxu0 0.0
    %1005 = vmatprep.subr.mxu0 0.0
    %1006 = vmatpush1.msra.mxu0 0.0
    %1007 = vmatprep.subr.mxu0 0.0
    %1008 = vmatpush1.msra.mxu0 0.0
    %1009 = vmatprep.subr.mxu0 0.0
    %1010 = vmatpush1.msra.mxu0 0.0
    %1011 = vmatprep.subr.mxu0 0.0
    %1012 = vmatpush1.msra.mxu0 0.0
    %1013 = vmatprep.subr.mxu0 0.0
    %1014 = vmatpush1.msra.mxu0 0.0
    %1015 = vmatprep.subr.mxu0 0.0
    %1016 = vmatpush1.msra.mxu0 0.0
    %1017 = vmatprep.subr.mxu0 0.0
    %1018 = vmatpush1.msra.mxu0 0.0
    %1019 = vmatprep.subr.mxu0 0.0
    %1020 = vmatpush1.msra.mxu0 0.0
    %1021 = vmatprep.subr.mxu0 0.0
    %1022 = vmatpush1.msra.mxu0 0.0
    %1023 = vmatprep.subr.mxu0 0.0
    %1024 = vmatpush1.msra.mxu0 0.0
    %1025 = vmatprep.subr.mxu0 0.0
    %1026 = vmatpush1.msra.mxu0 0.0
    %1027 = vmatprep.subr.mxu0 0.0
    %1028 = vmatpush1.msra.mxu0 0.0
    %1029 = vmatprep.subr.mxu0 0.0
    %1030 = vmatpush1.msra.mxu0 0.0
    %1031 = vmatprep.subr.mxu0 0.0
    %1032 = vmatpush1.msra.mxu0 0.0
    %1033 = vmatprep.mubr.f32.mxu0 0.0
    %1034 = vmatmul.mubr.f32.gmra.mrb[0].mxu0 %v964
    %v1035 = vpop.f32.mrb[0].mxu0
    %v1036 = vadd.f32 0.0, %v1035
    %v1037 = vpop.f32.mrb[0].mxu0
    %1038 = vmatprep.mubr.f32.mxu0 0.0
    %1039 = vmatmul.mubr.f32.gmra.mrb[0].mxu0 %v967
    %v1040 = vpop.f32.mrb[0].mxu0
    %v1041 = vadd.f32 0.0, %v1040
    %v1042 = vpop.f32.mrb[0].mxu0
    %1043 = vdwg.mxu0
    %v1044 = vadd.f32 %v27, %v1036
    %v1045 = vadd.f32 %v28, %v1041
    %v1046 = vsel %vm36, %v1044, 0.0
    %1047 = vadd.xlane.f32.xlu0 %v1046
    %v1048 = vpop.xlane.xlu0 %1047
    %v1049 = vsel %vm36, %v1045, 0.0
    %1050 = vadd.xlane.f32.xlu0 %v1049
    %v1051 = vpop.xlane.xlu0 %1050
    %v1052 = vrcp.pop 32.0
    %v1053 = vmul.f32 %v1048, %v1052
    %v1054 = vmul.f32 %v1051, %v1052
    %v1055 = vsub.f32 %v1044, %v1053
    %v1056 = vsub.f32 %v1045, %v1054
    %v1057 = vmul.f32 %v1055, %v1055
    %v1058 = vmul.f32 %v1056, %v1056
    %v1059 = vsel %vm36, %v1057, 0.0
    %1060 = vadd.xlane.f32.xlu0 %v1059
    %v1061 = vpop.xlane.xlu0 %1060
    %v1062 = vsel %vm36, %v1058, 0.0
    %1063 = vadd.xlane.f32.xlu0 %v1062
    %v1064 = vpop.xlane.xlu0 %1063
    %v1065 = vmul.f32 %v1061, %v1052
    %v1066 = vmul.f32 %v1064, %v1052
    %v1067 = vadd.f32 %v1065, 1e-05
    %v1068 = vadd.f32 %v1066, 1e-05
    %v1069 = vrsqrt.pop %v1067
    %v1070 = vrsqrt.pop %v1068
    %v1071 = vmul.f32 %v1055, %v1069
    %v1072 = vmul.f32 %v1056, %v1070
    %v1073 = vlaneseq
    %v1074 = vshrl.u32 %v1073, 7
    %v1075 = vsub.s32 0, %v1074
    %v1076 = vrot.slane %v35, %v1075
    %v1077 = vmul.f32 %v1071, %v1076
    %v1078 = vmul.f32 %v1072, %v1076
    %v1079 = vlaneseq
    %v1080 = vshrl.u32 %v1079, 7
    %v1081 = vsub.s32 1, %v1080
    %v1082 = vrot.slane %v35, %v1081
    %v1083 = vadd.f32 %v1077, %v1082
    %v1084 = vadd.f32 %v1078, %v1082
    %v1085 = vld [vmem:[%s4] sm:$0xff]
    %v1086 = vld [vmem:[%s4 + $0x8] sm:$0xff]
    %v1087 = vld [vmem:[%s4 + $0x10] sm:$0xff]
    %v1088 = vld [vmem:[%s4 + $0x18] sm:$0xff]
    %v1090 = vsel %vm36, %v1083, 0
    %v1093 = vsel %vm36, %v1084, 0
    %1095 = vmatprep.subr.mxu0 0.0
    %1096 = vmatpush1.msra.mxu0 %v1085
    %1097 = vmatprep.subr.mxu0 0.0
    %1098 = vmatpush1.msra.mxu0 %v1086
    %1099 = vmatprep.subr.mxu0 0.0
    %1100 = vmatpush1.msra.mxu0 %v1087
    %1101 = vmatprep.subr.mxu0 0.0
    %1102 = vmatpush1.msra.mxu0 %v1088
    %1103 = vmatprep.subr.mxu0 0.0
    %1104 = vmatpush1.msra.mxu0 0.0
    %1105 = vmatprep.subr.mxu0 0.0
    %1106 = vmatpush1.msra.mxu0 0.0
    %1107 = vmatprep.subr.mxu0 0.0
    %1108 = vmatpush1.msra.mxu0 0.0
    %1109 = vmatprep.subr.mxu0 0.0
    %1110 = vmatpush1.msra.mxu0 0.0
    %1111 = vmatprep.subr.mxu0 0.0
    %1112 = vmatpush1.msra.mxu0 0.0
    %1113 = vmatprep.subr.mxu0 0.0
    %1114 = vmatpush1.msra.mxu0 0.0
    %1115 = vmatprep.subr.mxu0 0.0
    %1116 = vmatpush1.msra.mxu0 0.0
    %1117 = vmatprep.subr.mxu0 0.0
    %1118 = vmatpush1.msra.mxu0 0.0
    %1119 = vmatprep.subr.mxu0 0.0
    %1120 = vmatpush1.msra.mxu0 0.0
    %1121 = vmatprep.subr.mxu0 0.0
    %1122 = vmatpush1.msra.mxu0 0.0
    %1123 = vmatprep.subr.mxu0 0.0
    %1124 = vmatpush1.msra.mxu0 0.0
    %1125 = vmatprep.subr.mxu0 0.0
    %1126 = vmatpush1.msra.mxu0 0.0
    %1127 = vmatprep.subr.mxu0 0.0
    %1128 = vmatpush1.msra.mxu0 0.0
    %1129 = vmatprep.subr.mxu0 0.0
    %1130 = vmatpush1.msra.mxu0 0.0
    %1131 = vmatprep.subr.mxu0 0.0
    %1132 = vmatpush1.msra.mxu0 0.0
    %1133 = vmatprep.subr.mxu0 0.0
    %1134 = vmatpush1.msra.mxu0 0.0
    %1135 = vmatprep.subr.mxu0 0.0
    %1136 = vmatpush1.msra.mxu0 0.0
    %1137 = vmatprep.subr.mxu0 0.0
    %1138 = vmatpush1.msra.mxu0 0.0
    %1139 = vmatprep.subr.mxu0 0.0
    %1140 = vmatpush1.msra.mxu0 0.0
    %1141 = vmatprep.subr.mxu0 0.0
    %1142 = vmatpush1.msra.mxu0 0.0
    %1143 = vmatprep.subr.mxu0 0.0
    %1144 = vmatpush1.msra.mxu0 0.0
    %1145 = vmatprep.subr.mxu0 0.0
    %1146 = vmatpush1.msra.mxu0 0.0
    %1147 = vmatprep.subr.mxu0 0.0
    %1148 = vmatpush1.msra.mxu0 0.0
    %1149 = vmatprep.subr.mxu0 0.0
    %1150 = vmatpush1.msra.mxu0 0.0
    %1151 = vmatprep.subr.mxu0 0.0
    %1152 = vmatpush1.msra.mxu0 0.0
    %1153 = vmatprep.subr.mxu0 0.0
    %1154 = vmatpush1.msra.mxu0 0.0
    %1155 = vmatprep.subr.mxu0 0.0
    %1156 = vmatpush1.msra.mxu0 0.0
    %1157 = vmatprep.subr.mxu0 0.0
    %1158 = vmatpush1.msra.mxu0 0.0
    %1159 = vmatprep.mubr.f32.mxu0 0.0
    %1160 = vmatmul.mubr.f32.gmra.mrb[0].mxu0 %v1090
    %v1161 = vpop.f32.mrb[0].mxu0
    %v1162 = vadd.f32 0.0, %v1161
    %v1163 = vpop.f32.mrb[0].mxu0
    %1164 = vmatprep.mubr.f32.mxu0 0.0
    %1165 = vmatmul.mubr.f32.gmra.mrb[0].mxu0 %v1093
    %v1166 = vpop.f32.mrb[0].mxu0
    %v1167 = vadd.f32 0.0, %v1166
    %v1168 = vpop.f32.mrb[0].mxu0
    %1169 = vdwg.mxu0
    %v1170 = vmul.f32 %v1162, 0.5
    %v1171 = vmul.f32 %v1167, 0.5
    %v1172 = vmul.f32 %v1162, 0.70710677
    %v1173 = vmul.f32 %v1167, 0.70710677
    %v1174 = verf.f32.pop %v1172
    %v1175 = verf.f32.pop %v1173
    %v1176 = vadd.f32 %v1174, 1.0
    %v1177 = vadd.f32 %v1175, 1.0
    %v1178 = vmul.f32 %v1170, %v1176
    %v1179 = vmul.f32 %v1171, %v1177
    %v1180 = vld [vmem:[%s5] sm:$0xff]
    %v1181 = vld [vmem:[%s5 + $0x8] sm:$0xff]
    %v1182 = vld [vmem:[%s5 + $0x10] sm:$0xff]
    %v1183 = vld [vmem:[%s5 + $0x18] sm:$0xff]
    %v1184 = vld [vmem:[%s5 + $0x20] sm:$0xff]
    %v1185 = vld [vmem:[%s5 + $0x28] sm:$0xff]
    %v1186 = vld [vmem:[%s5 + $0x30] sm:$0xff]
    %v1187 = vld [vmem:[%s5 + $0x38] sm:$0xff]
    %v1188 = vld [vmem:[%s5 + $0x40] sm:$0xff]
    %v1189 = vld [vmem:[%s5 + $0x48] sm:$0xff]
    %v1190 = vld [vmem:[%s5 + $0x50] sm:$0xff]
    %v1191 = vld [vmem:[%s5 + $0x58] sm:$0xff]
    %v1192 = vld [vmem:[%s5 + $0x60] sm:$0xff]
    %v1193 = vld [vmem:[%s5 + $0x68] sm:$0xff]
    %v1194 = vld [vmem:[%s5 + $0x70] sm:$0xff]
    %v1195 = vld [vmem:[%s5 + $0x78] sm:$0xff]
    %1196 = vmatprep.subr.mxu0 0.0
    %1197 = vmatpush1.msra.mxu0 %v1180
    %1198 = vmatprep.subr.mxu0 0.0
    %1199 = vmatpush1.msra.mxu0 %v1181
    %1200 = vmatprep.subr.mxu0 0.0
    %1201 = vmatpush1.msra.mxu0 %v1182
    %1202 = vmatprep.subr.mxu0 0.0
    %1203 = vmatpush1.msra.mxu0 %v1183
    %1204 = vmatprep.subr.mxu0 0.0
    %1205 = vmatpush1.msra.mxu0 %v1184
    %1206 = vmatprep.subr.mxu0 0.0
    %1207 = vmatpush1.msra.mxu0 %v1185
    %1208 = vmatprep.subr.mxu0 0.0
    %1209 = vmatpush1.msra.mxu0 %v1186
    %1210 = vmatprep.subr.mxu0 0.0
    %1211 = vmatpush1.msra.mxu0 %v1187
    %1212 = vmatprep.subr.mxu0 0.0
    %1213 = vmatpush1.msra.mxu0 %v1188
    %1214 = vmatprep.subr.mxu0 0.0
    %1215 = vmatpush1.msra.mxu0 %v1189
    %1216 = vmatprep.subr.mxu0 0.0
    %1217 = vmatpush1.msra.mxu0 %v1190
    %1218 = vmatprep.subr.mxu0 0.0
    %1219 = vmatpush1.msra.mxu0 %v1191
    %1220 = vmatprep.subr.mxu0 0.0
    %1221 = vmatpush1.msra.mxu0 %v1192
    %1222 = vmatprep.subr.mxu0 0.0
    %1223 = vmatpush1.msra.mxu0 %v1193
    %1224 = vmatprep.subr.mxu0 0.0
    %1225 = vmatpush1.msra.mxu0 %v1194
    %1226 = vmatprep.subr.mxu0 0.0
    %1227 = vmatpush1.msra.mxu0 %v1195
    %1228 = vmatprep.subr.mxu0 0.0
    %1229 = vmatpush1.msra.mxu0 0.0
    %1230 = vmatprep.subr.mxu0 0.0
    %1231 = vmatpush1.msra.mxu0 0.0
    %1232 = vmatprep.subr.mxu0 0.0
    %1233 = vmatpush1.msra.mxu0 0.0
    %1234 = vmatprep.subr.mxu0 0.0
    %1235 = vmatpush1.msra.mxu0 0.0
    %1236 = vmatprep.subr.mxu0 0.0
    %1237 = vmatpush1.msra.mxu0 0.0
    %1238 = vmatprep.subr.mxu0 0.0
    %1239 = vmatpush1.msra.mxu0 0.0
    %1240 = vmatprep.subr.mxu0 0.0
    %1241 = vmatpush1.msra.mxu0 0.0
    %1242 = vmatprep.subr.mxu0 0.0
    %1243 = vmatpush1.msra.mxu0 0.0
    %1244 = vmatprep.subr.mxu0 0.0
    %1245 = vmatpush1.msra.mxu0 0.0
    %1246 = vmatprep.subr.mxu0 0.0
    %1247 = vmatpush1.msra.mxu0 0.0
    %1248 = vmatprep.subr.mxu0 0.0
    %1249 = vmatpush1.msra.mxu0 0.0
    %1250 = vmatprep.subr.mxu0 0.0
    %1251 = vmatpush1.msra.mxu0 0.0
    %1252 = vmatprep.subr.mxu0 0.0
    %1253 = vmatpush1.msra.mxu0 0.0
    %1254 = vmatprep.subr.mxu0 0.0
    %1255 = vmatpush1.msra.mxu0 0.0
    %1256 = vmatprep.subr.mxu0 0.0
    %1257 = vmatpush1.msra.mxu0 0.0
    %1258 = vmatprep.subr.mxu0 0.0
    %1259 = vmatpush1.msra.mxu0 0.0
    %1260 = vmatprep.mubr.f32.mxu0 0.0
    %1261 = vmatmul.mubr.f32.gmra.mrb[0].mxu0 %v1178
    %v1262 = vpop.f32.mrb[0].mxu0
    %v1263 = vadd.f32 0.0, %v1262
    %v1264 = vpop.f32.mrb[0].mxu0
    %1265 = vmatprep.mubr.f32.mxu0 0.0
    %1266 = vmatmul.mubr.f32.gmra.mrb[0].mxu0 %v1179
    %v1267 = vpop.f32.mrb[0].mxu0
    %v1268 = vadd.f32 0.0, %v1267
    %v1269 = vpop.f32.mrb[0].mxu0
    %1270 = vdwg.mxu0
    %v1271 = vadd.f32 %v1083, %v1263
    %v1272 = vadd.f32 %v1084, %v1268
    %v1273 = vsel %vm36, %v1271, 0.0
    %1274 = vadd.xlane.f32.xlu0 %v1273
    %v1275 = vpop.xlane.xlu0 %1274
    %v1276 = vsel %vm36, %v1272, 0.0
    %1277 = vadd.xlane.f32.xlu0 %v1276
    %v1278 = vpop.xlane.xlu0 %1277
    %v1279 = vmul.f32 %v1275, %v1052
    %v1280 = vmul.f32 %v1278, %v1052
    %v1281 = vsub.f32 %v1271, %v1279
    %v1282 = vsub.f32 %v1272, %v1280
    %v1283 = vmul.f32 %v1281, %v1281
    %v1284 = vmul.f32 %v1282, %v1282
    %v1285 = vsel %vm36, %v1283, 0.0
    %1286 = vadd.xlane.f32.xlu0 %v1285
    %v1287 = vpop.xlane.xlu0 %1286
    %v1288 = vsel %vm36, %v1284, 0.0
    %1289 = vadd.xlane.f32.xlu0 %v1288
    %v1290 = vpop.xlane.xlu0 %1289
    %v1291 = vmul.f32 %v1287, %v1052
    %v1292 = vmul.f32 %v1290, %v1052
    %v1293 = vadd.f32 %v1291, 1e-05
    %v1294 = vadd.f32 %v1292, 1e-05
    %v1295 = vrsqrt.pop %v1293
    %v1296 = vrsqrt.pop %v1294
    %v1297 = vmul.f32 %v1281, %v1295
    %v1298 = vmul.f32 %v1282, %v1296
    %v1299 = vmul.f32 %v1297, %v1076
    %v1300 = vmul.f32 %v1298, %v1076
    %v1301 = vadd.f32 %v1299, %v1082
    %v1302 = vadd.f32 %v1300, %v1082
    %1303 = vst.msk [vmem:[#allocation3] sm:$0xff] %vm36, %v1301
    %1304 = vst.msk [vmem:[#allocation3 + $0x8] sm:$0xff] %vm36, %v1302
    // Predicated region
    $region30: #{encoder_forward.1} parent=1 // pred_check
      _
    $region31: #{encoder_forward.1} parent=1 // pred_check_branch
      %1306 = sbr.rel (0) target = $region33
    $region32: #{encoder_forward.1} parent=1 // pred_region
      %s1308 = ssub.s32 256, 256
      %1309 = vsyncadd [#allocation4], %s1308
      %s1310 = sshll.u32 [#allocation3], 4
      %s1311 = int_to_ptr.vmem [resolvable:$true] %s1310
      %1316 = dma.vmem_to_hbm [thread:$0]  %s1311, 256, %s7, [#allocation4], 128, 128, 8
    $region33: #{encoder_forward.1} parent=1 // pred_fallthru
      _
    // Predicated region
    $region34: #{encoder_forward.1} parent=1 // pred_check
      _
    $region35: #{encoder_forward.1} parent=1 // pred_check_branch
      %1318 = sbr.rel (0) target = $region37
    $region36: #{encoder_forward.1} parent=1 // pred_region
      %1319 = dma.done [#allocation4], 256
    $region37: #{encoder_forward.1} parent=1 // pred_fallthru
      _
    %1320 = vsyncpa [#allocation4], 1

</llo_original>
